<compile_context>
chip_gen: v7x
topology: tpu7x:2x2x1
jax: 0.10.0
libtpu: 0.0.40
codegen_flags: <defaults>
</compile_context>

<pallas_src>
import functools

import jax
import jax.numpy as jnp
from jax.experimental import pallas as pl
from jax.experimental.pallas import tpu as pltpu


def _rup(x, m):
    return (x + m - 1) // m * m


def _padded_tile_bytes(shape, itemsize=4):
    """VMEM bytes of one block, accounting for (8, 128) tiling of the minor dims."""
    lead = 1
    for d in shape[:-2]:
        lead *= d
    if len(shape) == 1:
        return _rup(shape[0], 128) * 8 * itemsize
    return lead * _rup(shape[-2], 8) * _rup(shape[-1], 128) * itemsize


def _vmem_limit_bytes(block_shapes, working_bytes=0):
    """Scoped-VMEM request: double-buffered blocks + working margin, HW-clamped."""
    need = 2 * sum(_padded_tile_bytes(s) for s in block_shapes) + working_bytes
    need = max(need + (4 << 20), 32 << 20)
    cap = 64 << 20                      # safe ceiling on v5e/v6e (128 MiB) and v7x (64 MiB)
    try:
        cap = min(cap, int(pltpu.get_tpu_info().vmem_capacity_bytes))
    except Exception:
        pass
    return int(min(need, cap))


def _choose_rows(total_rows, row_bytes, target_bytes=4 << 20):
    """Row tile: ~target_bytes per input block, >=2 grid steps when possible."""
    t = max(8, min(total_rows, target_bytes // max(row_bytes, 1)))
    if total_rows > 8 and t > (total_rows + 1) // 2:
        t = (total_rows + 1) // 2       # keep >= 2 grid steps for megacore
    align = 128 if t >= 128 else 8
    t = max(align, t // align * align)
    return t


def _choose_cout_tile(cout):
    for t in (256, 128):
        if cout > t and cout % t == 0:
            return t
    return cout


# ----------------------------------------------------------------------------
# Pallas kernels
# ----------------------------------------------------------------------------
def _downsample_conv_kernel(xee_ref, xeo_ref, xoe_ref, xoo_ref, w_ref, b_ref,
                            o_ref, *, bf16_matmul=False):
    """Fused im2col + 3x3/stride-2 conv for one image x one Cout tile.

    x**_ref: even/odd row/column quadrants of the zero-padded NHWC input.  Each
    of the nine conv taps is a unit-stride shifted (Ho, Wo, C) window of one
    quadrant, so no strided loads and no HBM-materialized patches.
    w_ref: (9, C, TCout) tap-major weights; b_ref: (1, TCout).
    """
    _, Ho, Wo, Cout = o_ref.shape
    C = xee_ref.shape[-1]
    quads = ((xee_ref, xeo_ref), (xoe_ref, xoo_ref))

    acc = jnp.zeros((Ho * Wo, Cout), jnp.float32)
    for kh in range(3):
        for kw in range(3):
            src = quads[kh % 2][kw % 2]
            r0, c0 = kh // 2, kw // 2
            xs = src[0, r0:r0 + Ho, c0:c0 + Wo, :].reshape(Ho * Wo, C)
            wt = w_ref[kh * 3 + kw]
            if bf16_matmul:
                xs = xs.astype(jnp.bfloat16)
                wt = wt.astype(jnp.bfloat16)
            acc = acc + jnp.dot(xs, wt, preferred_element_type=jnp.float32)

    out = acc + b_ref[...].astype(jnp.float32)
    o_ref[...] = out.reshape(1, Ho, Wo, Cout).astype(o_ref.dtype)


def _pool_matmul_kernel(x_ref, q_ref, o_ref):
    """out = x @ Q: the constant Q does the 2x2 average + lane compaction."""
    o_ref[...] = jnp.dot(x_ref[...], q_ref[...],
                         preferred_element_type=jnp.float32).astype(o_ref.dtype)


# ----------------------------------------------------------------------------
# Forward passes
# ----------------------------------------------------------------------------
@functools.partial(jax.jit, static_argnames=("bf16_matmul",))
def downsample_with_conv(x, w, b, *, bf16_matmul=False):
    """x: (N,C,H,W); pad (0,1,0,1); Conv2d(C->Cout, k=3, s=2, p=0)."""
    N, C, H, W = x.shape
    Cout = w.shape[0]
    Ho = (H + 1 - 3) // 2 + 1
    Wo = (W + 1 - 3) // 2 + 1

    # ---- XLA glue (single cheap pass): NCHW->NHWC, asymmetric pad, parity split
    # NOTE: the module boundary is NCHW; keeping NHWC end-to-end would drop the
    # two transposes, but that changes the interface, so they stay here.
    xn = jnp.transpose(x, (0, 2, 3, 1))                     # NHWC (channel-minor)
    xp = jnp.pad(xn, ((0, 0), (0, 1), (0, 1), (0, 0)))      # right/bottom zero pad
    x_ee = xp[:, 0::2, 0::2, :][:, :Ho + 1, :Wo + 1, :]
    x_eo = xp[:, 0::2, 1::2, :][:, :Ho + 1, :Wo, :]
    x_oe = xp[:, 1::2, 0::2, :][:, :Ho, :Wo + 1, :]
    x_oo = xp[:, 1::2, 1::2, :][:, :Ho, :Wo, :]
    w_taps = jnp.transpose(w, (2, 3, 1, 0)).reshape(9, C, Cout)   # (tap, Cin, Cout)
    b2 = b.reshape(1, Cout)

    TCout = _choose_cout_tile(Cout)
    n_ct = Cout // TCout

    quad_blocks = [(1, Ho + 1, Wo + 1, C), (1, Ho + 1, Wo, C),
                   (1, Ho, Wo + 1, C), (1, Ho, Wo, C)]
    blocks = quad_blocks + [(9, C, TCout), (1, TCout), (1, Ho, Wo, TCout)]
    working = 4 * _padded_tile_bytes((Ho * Wo, max(C, TCout)))
    limit = _vmem_limit_bytes(blocks, working)

    kernel = functools.partial(_downsample_conv_kernel, bf16_matmul=bf16_matmul)
    y = pl.pallas_call(
        kernel,
        out_shape=jax.ShapeDtypeStruct((N, Ho, Wo, Cout), x.dtype),
        grid_spec=pltpu.PrefetchScalarGridSpec(
            num_scalar_prefetch=0,
            grid=(N, n_ct),
            in_specs=[
                pl.BlockSpec(quad_blocks[0], lambda n, j: (n, 0, 0, 0)),
                pl.BlockSpec(quad_blocks[1], lambda n, j: (n, 0, 0, 0)),
                pl.BlockSpec(quad_blocks[2], lambda n, j: (n, 0, 0, 0)),
                pl.BlockSpec(quad_blocks[3], lambda n, j: (n, 0, 0, 0)),
                pl.BlockSpec((9, C, TCout), lambda n, j: (0, 0, j)),
                pl.BlockSpec((1, TCout), lambda n, j: (0, j)),
            ],
            out_specs=pl.BlockSpec((1, Ho, Wo, TCout), lambda n, j: (n, 0, 0, j)),
        ),
        compiler_params=pltpu.CompilerParams(
            dimension_semantics=("parallel", "parallel"),
            vmem_limit_bytes=limit),
    )(x_ee, x_eo, x_oe, x_oo, w_taps, b2)
    return jnp.transpose(y, (0, 3, 1, 2))                   # back to NCHW


def _pool_group(ho, wo):
    """Group g output rows per kernel row so the output lane dim g*wo >= 128."""
    if wo >= 128:
        return 1
    for d in range(1, ho + 1):
        if ho % d == 0 and d * wo >= 128:
            return d
    return ho


@jax.jit
def downsample_avgpool(x):
    """F.avg_pool2d(x, kernel_size=2, stride=2) on NCHW input, fully fused."""
    N, C, H, W = x.shape
    Ho, Wo = H // 2, W // 2
    B = N * C
    xs = x[:, :, :2 * Ho, :]                 # floor behaviour for odd H (no-op if even)

    g = _pool_group(Ho, Wo)
    Kin, Lout = g * 2 * W, g * Wo
    R = B * (Ho // g)
    a = xs.reshape(R, Kin)                   # contiguous reshape: no data movement

    # Constant pooling matrix: output col o = gi*Wo + wo sums input cols
    # j = gi*2W + {2wo, 2wo+1, W+2wo, W+2wo+1}, scaled by 0.25.
    j = jnp.arange(Kin)
    gi, u = j // (2 * W), j % (2 * W)
    w_in = jnp.where(u < W, u, u - W)
    col = gi * Wo + w_in // 2
    valid = w_in < 2 * Wo                    # odd-W: drop the last input column
    q = jnp.where(valid[:, None] & (col[:, None] == jnp.arange(Lout)[None, :]),
                  jnp.asarray(0.25, x.dtype), jnp.asarray(0, x.dtype))

    TR = _choose_rows(R, Kin * x.dtype.itemsize)
    Rp = _rup(R, TR)
    if Rp != R:
        a = jnp.pad(a, ((0, Rp - R), (0, 0)))
    limit = _vmem_limit_bytes([(TR, Kin), (Kin, Lout), (TR, Lout)])

    out = pl.pallas_call(
        _pool_matmul_kernel,
        out_shape=jax.ShapeDtypeStruct((Rp, Lout), x.dtype),
        grid_spec=pltpu.PrefetchScalarGridSpec(
            num_scalar_prefetch=0,
            grid=(Rp // TR,),
            in_specs=[pl.BlockSpec((TR, Kin), lambda i: (i, 0)),
                      pl.BlockSpec((Kin, Lout), lambda i: (0, 0))],
            out_specs=pl.BlockSpec((TR, Lout), lambda i: (i, 0)),
        ),
        compiler_params=pltpu.CompilerParams(
            dimension_semantics=("parallel",),
            vmem_limit_bytes=limit),
    )(a, q)
    return out[:R].reshape(N, C, Ho, Wo)


def downsample_forward(x, with_conv, w=None, b=None):
    if with_conv:
        return downsample_with_conv(x, w, b)
    return downsample_avgpool(x)


# ----------------------------------------------------------------------------
# Pure-JAX references (verification only)
# ----------------------------------------------------------------------------
def _conv_ref(x, w, b):
    xp = jnp.pad(x, ((0, 0), (0, 0), (0, 1), (0, 1)))
    y = jax.lax.conv_general_dilated(
        xp, w, window_strides=(2, 2), padding="VALID",
        dimension_numbers=("NCHW", "OIHW", "NCHW"),
        precision=jax.lax.Precision.HIGHEST)
    return y + b.reshape(1, -1, 1, 1)


def _pool_ref(x):
    N, C, H, W = x.shape
    Ho, Wo = H // 2, W // 2
    xs = x[:, :, :2 * Ho, :2 * Wo].reshape(N, C, Ho, 2, Wo, 2)
    return xs.mean(axis=(3, 5))


if __name__ == "__main__":
    key = jax.random.PRNGKey(0)
    k_x, k_w, k_b = jax.random.split(key, 3)

    N, C, H, W = 2, 4, 16, 16
    x = jax.random.normal(k_x, (N, C, H, W), jnp.float32)

    # Deterministic synthetic Conv2d(C, C, kernel_size=3, stride=2) parameters
    # (uniform +-1/sqrt(fan_in), like PyTorch's default init).
    fan_in = C * 3 * 3
    bound = 1.0 / (fan_in ** 0.5)
    w = jax.random.uniform(k_w, (C, C, 3, 3), jnp.float32, -bound, bound)
    b = jax.random.uniform(k_b, (C,), jnp.float32, -bound, bound)

    y_conv = downsample_forward(x, with_conv=True, w=w, b=b)
    y_pool = downsample_forward(x, with_conv=False)
    jax.block_until_ready((y_conv, y_pool))

    assert y_conv.shape == (N, C, 8, 8), y_conv.shape
    assert y_pool.shape == (N, C, 8, 8), y_pool.shape
    assert y_conv.dtype == jnp.float32 and y_pool.dtype == jnp.float32

    err_c = float(jnp.max(jnp.abs(y_conv - _conv_ref(x, w, b))))
    err_p = float(jnp.max(jnp.abs(y_pool - _pool_ref(x))))
    assert err_c < 2e-3, err_c
    assert err_p < 1e-3, err_p

    print("KERNEL_OK")
</pallas_src>

<mosaic_0001>
module attributes {stable_mosaic.version = 11 : i64} {
  func.func @_downsample_conv_kernel(%arg0: i32, %arg1: i32, %arg2: memref<1x9x9x4xf32, #tpu.memory_space<vmem>>, %arg3: memref<1x9x8x4xf32, #tpu.memory_space<vmem>>, %arg4: memref<1x8x9x4xf32, #tpu.memory_space<vmem>>, %arg5: memref<1x8x8x4xf32, #tpu.memory_space<vmem>>, %arg6: memref<9x4x4xf32, #tpu.memory_space<vmem>>, %arg7: memref<1x4xf32, #tpu.memory_space<vmem>>, %arg8: memref<1x8x8x4xf32, #tpu.memory_space<vmem>>) attributes {dimension_semantics = [#tpu.dimension_semantics<parallel>, #tpu.dimension_semantics<parallel>], iteration_bounds = array<i64: 2, 1>, scalar_prefetch = 0 : i64, scratch_operands = 0 : i64, tpu.core_type = #tpu.core_type<tc>, window_params = [{transform_indices = @transform_0, window_bounds = array<i64: 1, 9, 9, 4>}, {transform_indices = @transform_1, window_bounds = array<i64: 1, 9, 8, 4>}, {transform_indices = @transform_2, window_bounds = array<i64: 1, 8, 9, 4>}, {transform_indices = @transform_3, window_bounds = array<i64: 1, 8, 8, 4>}, {transform_indices = @transform_4, window_bounds = array<i64: 9, 4, 4>}, {transform_indices = @transform_5, window_bounds = array<i64: 1, 4>}, {transform_indices = @transform_6, window_bounds = array<i64: 1, 8, 8, 4>}]} {
    %cst = arith.constant 0.000000e+00 : f32
    %0 = vector.broadcast %cst : f32 to vector<64x4xf32>
    %c0 = arith.constant 0 : index
    %c0_0 = arith.constant 0 : index
    %c0_1 = arith.constant 0 : index
    %c0_2 = arith.constant 0 : index
    %1 = vector.load %arg2[%c0, %c0_0, %c0_1, %c0_2] : memref<1x9x9x4xf32, #tpu.memory_space<vmem>>, vector<1x8x8x4xf32>
    %2 = vector.shape_cast %1 : vector<1x8x8x4xf32> to vector<8x8x4xf32>
    %3 = vector.shape_cast %2 : vector<8x8x4xf32> to vector<64x4xf32>
    %c0_3 = arith.constant 0 : index
    %c0_4 = arith.constant 0 : index
    %c0_5 = arith.constant 0 : index
    %4 = vector.load %arg6[%c0_3, %c0_4, %c0_5] : memref<9x4x4xf32, #tpu.memory_space<vmem>>, vector<1x4x4xf32>
    %5 = vector.shape_cast %4 : vector<1x4x4xf32> to vector<4x4xf32>
    %cst_6 = arith.constant dense<0.000000e+00> : vector<64x4xf32>
    %6 = tpu.matmul %3, %5, %cst_6 {dimension_numbers = #tpu.dot_dimension_numbers<[1], [0], [0], [1], [0, 0, 1, 1], [], []>} : vector<64x4xf32>, vector<4x4xf32>, vector<64x4xf32> -> vector<64x4xf32>
    %7 = arith.addf %0, %6 : vector<64x4xf32>
    %c0_7 = arith.constant 0 : index
    %c0_8 = arith.constant 0 : index
    %c0_9 = arith.constant 0 : index
    %c0_10 = arith.constant 0 : index
    %8 = vector.load %arg3[%c0_7, %c0_8, %c0_9, %c0_10] : memref<1x9x8x4xf32, #tpu.memory_space<vmem>>, vector<1x8x8x4xf32>
    %9 = vector.shape_cast %8 : vector<1x8x8x4xf32> to vector<8x8x4xf32>
    %10 = vector.shape_cast %9 : vector<8x8x4xf32> to vector<64x4xf32>
    %c1 = arith.constant 1 : index
    %c0_11 = arith.constant 0 : index
    %c0_12 = arith.constant 0 : index
    %11 = vector.load %arg6[%c1, %c0_11, %c0_12] : memref<9x4x4xf32, #tpu.memory_space<vmem>>, vector<1x4x4xf32>
    %12 = vector.shape_cast %11 : vector<1x4x4xf32> to vector<4x4xf32>
    %cst_13 = arith.constant dense<0.000000e+00> : vector<64x4xf32>
    %13 = tpu.matmul %10, %12, %cst_13 {dimension_numbers = #tpu.dot_dimension_numbers<[1], [0], [0], [1], [0, 0, 1, 1], [], []>} : vector<64x4xf32>, vector<4x4xf32>, vector<64x4xf32> -> vector<64x4xf32>
    %14 = arith.addf %7, %13 : vector<64x4xf32>
    %c0_14 = arith.constant 0 : index
    %c0_15 = arith.constant 0 : index
    %c1_16 = arith.constant 1 : index
    %c0_17 = arith.constant 0 : index
    %15 = vector.load %arg2[%c0_14, %c0_15, %c1_16, %c0_17] : memref<1x9x9x4xf32, #tpu.memory_space<vmem>>, vector<1x8x8x4xf32>
    %16 = vector.shape_cast %15 : vector<1x8x8x4xf32> to vector<8x8x4xf32>
    %17 = vector.shape_cast %16 : vector<8x8x4xf32> to vector<64x4xf32>
    %c2 = arith.constant 2 : index
    %c0_18 = arith.constant 0 : index
    %c0_19 = arith.constant 0 : index
    %18 = vector.load %arg6[%c2, %c0_18, %c0_19] : memref<9x4x4xf32, #tpu.memory_space<vmem>>, vector<1x4x4xf32>
    %19 = vector.shape_cast %18 : vector<1x4x4xf32> to vector<4x4xf32>
    %cst_20 = arith.constant dense<0.000000e+00> : vector<64x4xf32>
    %20 = tpu.matmul %17, %19, %cst_20 {dimension_numbers = #tpu.dot_dimension_numbers<[1], [0], [0], [1], [0, 0, 1, 1], [], []>} : vector<64x4xf32>, vector<4x4xf32>, vector<64x4xf32> -> vector<64x4xf32>
    %21 = arith.addf %14, %20 : vector<64x4xf32>
    %c0_21 = arith.constant 0 : index
    %c0_22 = arith.constant 0 : index
    %c0_23 = arith.constant 0 : index
    %c0_24 = arith.constant 0 : index
    %22 = vector.load %arg4[%c0_21, %c0_22, %c0_23, %c0_24] : memref<1x8x9x4xf32, #tpu.memory_space<vmem>>, vector<1x8x8x4xf32>
    %23 = vector.shape_cast %22 : vector<1x8x8x4xf32> to vector<8x8x4xf32>
    %24 = vector.shape_cast %23 : vector<8x8x4xf32> to vector<64x4xf32>
    %c3 = arith.constant 3 : index
    %c0_25 = arith.constant 0 : index
    %c0_26 = arith.constant 0 : index
    %25 = vector.load %arg6[%c3, %c0_25, %c0_26] : memref<9x4x4xf32, #tpu.memory_space<vmem>>, vector<1x4x4xf32>
    %26 = vector.shape_cast %25 : vector<1x4x4xf32> to vector<4x4xf32>
    %cst_27 = arith.constant dense<0.000000e+00> : vector<64x4xf32>
    %27 = tpu.matmul %24, %26, %cst_27 {dimension_numbers = #tpu.dot_dimension_numbers<[1], [0], [0], [1], [0, 0, 1, 1], [], []>} : vector<64x4xf32>, vector<4x4xf32>, vector<64x4xf32> -> vector<64x4xf32>
    %28 = arith.addf %21, %27 : vector<64x4xf32>
    %c0_28 = arith.constant 0 : index
    %c0_29 = arith.constant 0 : index
    %c0_30 = arith.constant 0 : index
    %c0_31 = arith.constant 0 : index
    %29 = vector.load %arg5[%c0_28, %c0_29, %c0_30, %c0_31] : memref<1x8x8x4xf32, #tpu.memory_space<vmem>>, vector<1x8x8x4xf32>
    %30 = vector.shape_cast %29 : vector<1x8x8x4xf32> to vector<8x8x4xf32>
    %31 = vector.shape_cast %30 : vector<8x8x4xf32> to vector<64x4xf32>
    %c4 = arith.constant 4 : index
    %c0_32 = arith.constant 0 : index
    %c0_33 = arith.constant 0 : index
    %32 = vector.load %arg6[%c4, %c0_32, %c0_33] : memref<9x4x4xf32, #tpu.memory_space<vmem>>, vector<1x4x4xf32>
    %33 = vector.shape_cast %32 : vector<1x4x4xf32> to vector<4x4xf32>
    %cst_34 = arith.constant dense<0.000000e+00> : vector<64x4xf32>
    %34 = tpu.matmul %31, %33, %cst_34 {dimension_numbers = #tpu.dot_dimension_numbers<[1], [0], [0], [1], [0, 0, 1, 1], [], []>} : vector<64x4xf32>, vector<4x4xf32>, vector<64x4xf32> -> vector<64x4xf32>
    %35 = arith.addf %28, %34 : vector<64x4xf32>
    %c0_35 = arith.constant 0 : index
    %c0_36 = arith.constant 0 : index
    %c1_37 = arith.constant 1 : index
    %c0_38 = arith.constant 0 : index
    %36 = vector.load %arg4[%c0_35, %c0_36, %c1_37, %c0_38] : memref<1x8x9x4xf32, #tpu.memory_space<vmem>>, vector<1x8x8x4xf32>
    %37 = vector.shape_cast %36 : vector<1x8x8x4xf32> to vector<8x8x4xf32>
    %38 = vector.shape_cast %37 : vector<8x8x4xf32> to vector<64x4xf32>
    %c5 = arith.constant 5 : index
    %c0_39 = arith.constant 0 : index
    %c0_40 = arith.constant 0 : index
    %39 = vector.load %arg6[%c5, %c0_39, %c0_40] : memref<9x4x4xf32, #tpu.memory_space<vmem>>, vector<1x4x4xf32>
    %40 = vector.shape_cast %39 : vector<1x4x4xf32> to vector<4x4xf32>
    %cst_41 = arith.constant dense<0.000000e+00> : vector<64x4xf32>
    %41 = tpu.matmul %38, %40, %cst_41 {dimension_numbers = #tpu.dot_dimension_numbers<[1], [0], [0], [1], [0, 0, 1, 1], [], []>} : vector<64x4xf32>, vector<4x4xf32>, vector<64x4xf32> -> vector<64x4xf32>
    %42 = arith.addf %35, %41 : vector<64x4xf32>
    %c0_42 = arith.constant 0 : index
    %c1_43 = arith.constant 1 : index
    %c0_44 = arith.constant 0 : index
    %c0_45 = arith.constant 0 : index
    %43 = vector.load %arg2[%c0_42, %c1_43, %c0_44, %c0_45] : memref<1x9x9x4xf32, #tpu.memory_space<vmem>>, vector<1x8x8x4xf32>
    %44 = vector.shape_cast %43 : vector<1x8x8x4xf32> to vector<8x8x4xf32>
    %45 = vector.shape_cast %44 : vector<8x8x4xf32> to vector<64x4xf32>
    %c6 = arith.constant 6 : index
    %c0_46 = arith.constant 0 : index
    %c0_47 = arith.constant 0 : index
    %46 = vector.load %arg6[%c6, %c0_46, %c0_47] : memref<9x4x4xf32, #tpu.memory_space<vmem>>, vector<1x4x4xf32>
    %47 = vector.shape_cast %46 : vector<1x4x4xf32> to vector<4x4xf32>
    %cst_48 = arith.constant dense<0.000000e+00> : vector<64x4xf32>
    %48 = tpu.matmul %45, %47, %cst_48 {dimension_numbers = #tpu.dot_dimension_numbers<[1], [0], [0], [1], [0, 0, 1, 1], [], []>} : vector<64x4xf32>, vector<4x4xf32>, vector<64x4xf32> -> vector<64x4xf32>
    %49 = arith.addf %42, %48 : vector<64x4xf32>
    %c0_49 = arith.constant 0 : index
    %c1_50 = arith.constant 1 : index
    %c0_51 = arith.constant 0 : index
    %c0_52 = arith.constant 0 : index
    %50 = vector.load %arg3[%c0_49, %c1_50, %c0_51, %c0_52] : memref<1x9x8x4xf32, #tpu.memory_space<vmem>>, vector<1x8x8x4xf32>
    %51 = vector.shape_cast %50 : vector<1x8x8x4xf32> to vector<8x8x4xf32>
    %52 = vector.shape_cast %51 : vector<8x8x4xf32> to vector<64x4xf32>
    %c7 = arith.constant 7 : index
    %c0_53 = arith.constant 0 : index
    %c0_54 = arith.constant 0 : index
    %53 = vector.load %arg6[%c7, %c0_53, %c0_54] : memref<9x4x4xf32, #tpu.memory_space<vmem>>, vector<1x4x4xf32>
    %54 = vector.shape_cast %53 : vector<1x4x4xf32> to vector<4x4xf32>
    %cst_55 = arith.constant dense<0.000000e+00> : vector<64x4xf32>
    %55 = tpu.matmul %52, %54, %cst_55 {dimension_numbers = #tpu.dot_dimension_numbers<[1], [0], [0], [1], [0, 0, 1, 1], [], []>} : vector<64x4xf32>, vector<4x4xf32>, vector<64x4xf32> -> vector<64x4xf32>
    %56 = arith.addf %49, %55 : vector<64x4xf32>
    %c0_56 = arith.constant 0 : index
    %c1_57 = arith.constant 1 : index
    %c1_58 = arith.constant 1 : index
    %c0_59 = arith.constant 0 : index
    %57 = vector.load %arg2[%c0_56, %c1_57, %c1_58, %c0_59] : memref<1x9x9x4xf32, #tpu.memory_space<vmem>>, vector<1x8x8x4xf32>
    %58 = vector.shape_cast %57 : vector<1x8x8x4xf32> to vector<8x8x4xf32>
    %59 = vector.shape_cast %58 : vector<8x8x4xf32> to vector<64x4xf32>
    %c8 = arith.constant 8 : index
    %c0_60 = arith.constant 0 : index
    %c0_61 = arith.constant 0 : index
    %60 = vector.load %arg6[%c8, %c0_60, %c0_61] : memref<9x4x4xf32, #tpu.memory_space<vmem>>, vector<1x4x4xf32>
    %61 = vector.shape_cast %60 : vector<1x4x4xf32> to vector<4x4xf32>
    %cst_62 = arith.constant dense<0.000000e+00> : vector<64x4xf32>
    %62 = tpu.matmul %59, %61, %cst_62 {dimension_numbers = #tpu.dot_dimension_numbers<[1], [0], [0], [1], [0, 0, 1, 1], [], []>} : vector<64x4xf32>, vector<4x4xf32>, vector<64x4xf32> -> vector<64x4xf32>
    %63 = arith.addf %56, %62 : vector<64x4xf32>
    %c0_63 = arith.constant 0 : index
    %c0_64 = arith.constant 0 : index
    %64 = vector.load %arg7[%c0_63, %c0_64] : memref<1x4xf32, #tpu.memory_space<vmem>>, vector<1x4xf32>
    %65 = vector.broadcast %64 : vector<1x4xf32> to vector<64x4xf32>
    %66 = arith.addf %63, %65 : vector<64x4xf32>
    %67 = vector.shape_cast %66 : vector<64x4xf32> to vector<1x8x8x4xf32>
    %c0_65 = arith.constant 0 : index
    %c0_66 = arith.constant 0 : index
    %c0_67 = arith.constant 0 : index
    %c0_68 = arith.constant 0 : index
    %68 = vector.load %arg8[%c0_65, %c0_66, %c0_67, %c0_68] : memref<1x8x8x4xf32, #tpu.memory_space<vmem>>, vector<1x8x8x4xf32>
    tpu.vector_store %arg8[%c0_65, %c0_66, %c0_67, %c0_68], %67 {strides = array<i32>} : memref<1x8x8x4xf32, #tpu.memory_space<vmem>>, vector<1x8x8x4xf32>,
    return
  }
  func.func @transform_0(%arg0: i32, %arg1: i32) -> (i32, i32, i32, i32) {
    %c0_i32 = arith.constant 0 : i32
    %c0_i32_0 = arith.constant 0 : i32
    %c0_i32_1 = arith.constant 0 : i32
    %c0_i32_2 = arith.constant 0 : i32
    return %arg0, %c0_i32, %c0_i32_0, %c0_i32_1 : i32, i32, i32, i32
  }
  func.func @transform_1(%arg0: i32, %arg1: i32) -> (i32, i32, i32, i32) {
    %c0_i32 = arith.constant 0 : i32
    %c0_i32_0 = arith.constant 0 : i32
    %c0_i32_1 = arith.constant 0 : i32
    %c0_i32_2 = arith.constant 0 : i32
    return %arg0, %c0_i32, %c0_i32_0, %c0_i32_1 : i32, i32, i32, i32
  }
  func.func @transform_2(%arg0: i32, %arg1: i32) -> (i32, i32, i32, i32) {
    %c0_i32 = arith.constant 0 : i32
    %c0_i32_0 = arith.constant 0 : i32
    %c0_i32_1 = arith.constant 0 : i32
    %c0_i32_2 = arith.constant 0 : i32
    return %arg0, %c0_i32, %c0_i32_0, %c0_i32_1 : i32, i32, i32, i32
  }
  func.func @transform_3(%arg0: i32, %arg1: i32) -> (i32, i32, i32, i32) {
    %c0_i32 = arith.constant 0 : i32
    %c0_i32_0 = arith.constant 0 : i32
    %c0_i32_1 = arith.constant 0 : i32
    %c0_i32_2 = arith.constant 0 : i32
    return %arg0, %c0_i32, %c0_i32_0, %c0_i32_1 : i32, i32, i32, i32
  }
  func.func @transform_4(%arg0: i32, %arg1: i32) -> (i32, i32, i32) {
    %c0_i32 = arith.constant 0 : i32
    %c0_i32_0 = arith.constant 0 : i32
    %c0_i32_1 = arith.constant 0 : i32
    return %c0_i32, %c0_i32_0, %arg1 : i32, i32, i32
  }
  func.func @transform_5(%arg0: i32, %arg1: i32) -> (i32, i32) {
    %c0_i32 = arith.constant 0 : i32
    %c0_i32_0 = arith.constant 0 : i32
    return %c0_i32, %arg1 : i32, i32
  }
  func.func @transform_6(%arg0: i32, %arg1: i32) -> (i32, i32, i32, i32) {
    %c0_i32 = arith.constant 0 : i32
    %c0_i32_0 = arith.constant 0 : i32
    %c0_i32_1 = arith.constant 0 : i32
    return %arg0, %c0_i32, %c0_i32_0, %arg1 : i32, i32, i32, i32
  }
}

</mosaic_0001>

<llo_original>
// kernel: downsample_with_conv.1
$region0: #{downsample_with_conv.1}
  #allocation0 [shape = 'u32[]', space=smem, size = 0x4, offset = 0x4, fixed_abs, tag = 'smem constant byte address 0x4 - core index']
  #allocation1 [shape = 'u32[144,128]{1,0:T(1,128)}', space=vmem, size = 0x12000, scoped, tag = 'internal scratch']
  %s0 = inlined_call_operand.vmem [shape: f32[2,9,9,4], index: 0, kind: input, shape index: {}]
  %s1 = inlined_call_operand.vmem [shape: f32[2,9,8,4], index: 1, kind: input, shape index: {}]
  %s2 = inlined_call_operand.vmem [shape: f32[2,8,9,4], index: 2, kind: input, shape index: {}]
  %s3 = inlined_call_operand.vmem [shape: f32[2,8,8,4], index: 3, kind: input, shape index: {}]
  %s4 = inlined_call_operand.vmem [shape: f32[9,4,4], index: 4, kind: input, shape index: {}]
  %s5 = inlined_call_operand.vmem [shape: f32[1,4], index: 5, kind: input, shape index: {}]
  %s6 = inlined_call_operand.vmem [shape: f32[2,8,8,4], index: 6, kind: output, shape index: {}]
  %s7 = sld [smem:[#allocation0]]
  $region57: #{downsample_with_conv.1} parent=0
    _
  %s9 = ssub.s32 1, %s7
  %s10 = scalar_select 0, %s9, %s7
  loop: start=0, step=1, limit=4
  $region2: #{downsample_with_conv.1} parent=0 // loop_pre_header
    _
  $region3: #{downsample_with_conv.1} parent=0 // loop_header
    %s12 = sphi 0, %s16
    %p13 = scmp.ge.s32.totalorder %s12, 4
    %s19 = sphi 0, %s31
    %s20 = sphi 0, %s27
    %s21 = sphi 0, %s19
    %s22 = sphi 0, %s20
    %s23 = sphi 0, %s21
    %s24 = sphi 0, %s22
    %s34 = sphi 0, %s36
    %s37 = sphi 0, %s34
    %s38 = sphi 0, %s37
    %s54 = sphi 0, %s38
    %s60 = sphi 0, %s62
    %s63 = sphi 0, %s60
    %s64 = sphi 0, %s63
    %s80 = sphi 0, %s64
    %s86 = sphi 0, %s88
    %s89 = sphi 0, %s86
    %s90 = sphi 0, %s89
    %s106 = sphi 0, %s90
    %s112 = sphi 0, %s114
    %s115 = sphi 0, %s112
    %s116 = sphi 0, %s115
    %s132 = sphi 0, %s116
    %s138 = sphi 0, %s140
    %s141 = sphi 0, %s138
    %s142 = sphi 0, %s141
    %s158 = sphi 0, %s142
    %s164 = sphi 0, %s166
    %s167 = sphi 0, %s164
    %s168 = sphi 0, %s167
    %s184 = sphi 0, %s168
    %s192 = sphi 0, %s194
    %s195 = sphi 0, %s192
    %s196 = sphi 0, %s195
    %s212 = sphi 0, %s196
  $region4: #{downsample_with_conv.1} parent=0 // loop_header_branch
    %15 = sbr.rel (%p13) target = $region8
  $region5: #{downsample_with_conv.1} parent=0 // loop_body
    %s17 = ssub.s32 %s12, 1
    %s18 = ssub.s32 %s12, 2
    %s25 = sadd.s32 1, %s20
    %p26 = scmp.ge.s32.totalorder %s25, 1
    %s27 = scalar_select %p26, 0, %s25
    %s28 = sadd.s32 1, %s19
    %s29 = scalar_select %p26, %s28, %s19
    %p30 = scmp.ge.s32.totalorder %s29, 2
    %s31 = scalar_select %p30, 0, %s29
    %s32 = ssub.s32 %s19, %s31
    %p33 = scmp.eq.s32.totalorder %s32, 0
    %s35 = sadd.s32 %s34, 1
    %s36 = scalar_select %p33, %s34, %s35
    %p39 = pneg %p33
    %p40 = scmp.eq.s32.totalorder %s12, 1
    %p41 = por %p39, %p40
    %p42 = scmp.ne.s32.totalorder %s34, %s37
    %p43 = scmp.eq.s32.totalorder %s12, 0
    %p44 = por %p42, %p43
    %p45 = scmp.ne.s32.totalorder %s34, %s37
    %p46 = scmp.eq.s32.totalorder %s17, 1
    %p47 = por %p45, %p46
    %p48 = scmp.ne.s32.totalorder %s37, %s38
    %p49 = scmp.eq.s32.totalorder %s17, 0
    %p50 = por %p48, %p49
    %p51 = scmp.ne.s32.totalorder %s37, %s38
    %p52 = scmp.eq.s32.totalorder %s18, 1
    %p53 = por %p51, %p52
    %p55 = scmp.ne.s32.totalorder %s38, %s54
    %p56 = scmp.eq.s32.totalorder %s18, 0
    %p57 = por %p55, %p56
    %s58 = ssub.s32 %s19, %s31
    %p59 = scmp.eq.s32.totalorder %s58, 0
    %s61 = sadd.s32 %s60, 1
    %s62 = scalar_select %p59, %s60, %s61
    %p65 = pneg %p59
    %p66 = scmp.eq.s32.totalorder %s12, 1
    %p67 = por %p65, %p66
    %p68 = scmp.ne.s32.totalorder %s60, %s63
    %p69 = scmp.eq.s32.totalorder %s12, 0
    %p70 = por %p68, %p69
    %p71 = scmp.ne.s32.totalorder %s60, %s63
    %p72 = scmp.eq.s32.totalorder %s17, 1
    %p73 = por %p71, %p72
    %p74 = scmp.ne.s32.totalorder %s63, %s64
    %p75 = scmp.eq.s32.totalorder %s17, 0
    %p76 = por %p74, %p75
    %p77 = scmp.ne.s32.totalorder %s63, %s64
    %p78 = scmp.eq.s32.totalorder %s18, 1
    %p79 = por %p77, %p78
    %p81 = scmp.ne.s32.totalorder %s64, %s80
    %p82 = scmp.eq.s32.totalorder %s18, 0
    %p83 = por %p81, %p82
    %s84 = ssub.s32 %s19, %s31
    %p85 = scmp.eq.s32.totalorder %s84, 0
    %s87 = sadd.s32 %s86, 1
    %s88 = scalar_select %p85, %s86, %s87
    %p91 = pneg %p85
    %p92 = scmp.eq.s32.totalorder %s12, 1
    %p93 = por %p91, %p92
    %p94 = scmp.ne.s32.totalorder %s86, %s89
    %p95 = scmp.eq.s32.totalorder %s12, 0
    %p96 = por %p94, %p95
    %p97 = scmp.ne.s32.totalorder %s86, %s89
    %p98 = scmp.eq.s32.totalorder %s17, 1
    %p99 = por %p97, %p98
    %p100 = scmp.ne.s32.totalorder %s89, %s90
    %p101 = scmp.eq.s32.totalorder %s17, 0
    %p102 = por %p100, %p101
    %p103 = scmp.ne.s32.totalorder %s89, %s90
    %p104 = scmp.eq.s32.totalorder %s18, 1
    %p105 = por %p103, %p104
    %p107 = scmp.ne.s32.totalorder %s90, %s106
    %p108 = scmp.eq.s32.totalorder %s18, 0
    %p109 = por %p107, %p108
    %s110 = ssub.s32 %s19, %s31
    %p111 = scmp.eq.s32.totalorder %s110, 0
    %s113 = sadd.s32 %s112, 1
    %s114 = scalar_select %p111, %s112, %s113
    %p117 = pneg %p111
    %p118 = scmp.eq.s32.totalorder %s12, 1
    %p119 = por %p117, %p118
    %p120 = scmp.ne.s32.totalorder %s112, %s115
    %p121 = scmp.eq.s32.totalorder %s12, 0
    %p122 = por %p120, %p121
    %p123 = scmp.ne.s32.totalorder %s112, %s115
    %p124 = scmp.eq.s32.totalorder %s17, 1
    %p125 = por %p123, %p124
    %p126 = scmp.ne.s32.totalorder %s115, %s116
    %p127 = scmp.eq.s32.totalorder %s17, 0
    %p128 = por %p126, %p127
    %p129 = scmp.ne.s32.totalorder %s115, %s116
    %p130 = scmp.eq.s32.totalorder %s18, 1
    %p131 = por %p129, %p130
    %p133 = scmp.ne.s32.totalorder %s116, %s132
    %p134 = scmp.eq.s32.totalorder %s18, 0
    %p135 = por %p133, %p134
    %s136 = ssub.s32 %s20, %s27
    %p137 = scmp.eq.s32.totalorder %s136, 0
    %s139 = sadd.s32 %s138, 1
    %s140 = scalar_select %p137, %s138, %s139
    %p143 = pneg %p137
    %p144 = scmp.eq.s32.totalorder %s12, 1
    %p145 = por %p143, %p144
    %p146 = scmp.ne.s32.totalorder %s138, %s141
    %p147 = scmp.eq.s32.totalorder %s12, 0
    %p148 = por %p146, %p147
    %p149 = scmp.ne.s32.totalorder %s138, %s141
    %p150 = scmp.eq.s32.totalorder %s17, 1
    %p151 = por %p149, %p150
    %p152 = scmp.ne.s32.totalorder %s141, %s142
    %p153 = scmp.eq.s32.totalorder %s17, 0
    %p154 = por %p152, %p153
    %p155 = scmp.ne.s32.totalorder %s141, %s142
    %p156 = scmp.eq.s32.totalorder %s18, 1
    %p157 = por %p155, %p156
    %p159 = scmp.ne.s32.totalorder %s142, %s158
    %p160 = scmp.eq.s32.totalorder %s18, 0
    %p161 = por %p159, %p160
    %s162 = ssub.s32 %s20, %s27
    %p163 = scmp.eq.s32.totalorder %s162, 0
    %s165 = sadd.s32 %s164, 1
    %s166 = scalar_select %p163, %s164, %s165
    %p169 = pneg %p163
    %p170 = scmp.eq.s32.totalorder %s12, 1
    %p171 = por %p169, %p170
    %p172 = scmp.ne.s32.totalorder %s164, %s167
    %p173 = scmp.eq.s32.totalorder %s12, 0
    %p174 = por %p172, %p173
    %p175 = scmp.ne.s32.totalorder %s164, %s167
    %p176 = scmp.eq.s32.totalorder %s17, 1
    %p177 = por %p175, %p176
    %p178 = scmp.ne.s32.totalorder %s167, %s168
    %p179 = scmp.eq.s32.totalorder %s17, 0
    %p180 = por %p178, %p179
    %p181 = scmp.ne.s32.totalorder %s167, %s168
    %p182 = scmp.eq.s32.totalorder %s18, 1
    %p183 = por %p181, %p182
    %p185 = scmp.ne.s32.totalorder %s168, %s184
    %p186 = scmp.eq.s32.totalorder %s18, 0
    %p187 = por %p185, %p186
    %s188 = ssub.s32 %s19, %s31
    %s189 = ssub.s32 %s20, %s27
    %s190 = sor.u32 %s188, %s189
    %p191 = scmp.eq.s32.totalorder %s190, 0
    %s193 = sadd.s32 %s192, 1
    %s194 = scalar_select %p191, %s192, %s193
    %p197 = pneg %p191
    %p198 = scmp.eq.s32.totalorder %s12, 1
    %p199 = por %p197, %p198
    %p200 = scmp.ne.s32.totalorder %s192, %s195
    %p201 = scmp.eq.s32.totalorder %s12, 0
    %p202 = por %p200, %p201
    %p203 = scmp.ne.s32.totalorder %s192, %s195
    %p204 = scmp.eq.s32.totalorder %s17, 1
    %p205 = por %p203, %p204
    %p206 = scmp.ne.s32.totalorder %s195, %s196
    %p207 = scmp.eq.s32.totalorder %s17, 0
    %p208 = por %p206, %p207
    %p209 = scmp.ne.s32.totalorder %s195, %s196
    %p210 = scmp.eq.s32.totalorder %s18, 1
    %p211 = por %p209, %p210
    %p213 = scmp.ne.s32.totalorder %s196, %s212
    %p214 = scmp.eq.s32.totalorder %s18, 0
    %p215 = por %p213, %p214
    %p216 = scmp.le.s32.totalorder 1, %s12
    %p217 = scmp.lt.s32.totalorder %s12, 3
    %p218 = pnand %p216, %p217
    %p219 = pneg %p218
    // Predicated region
    $region9: #{downsample_with_conv.1} parent=5 // pred_check
      _
    $region10: #{downsample_with_conv.1} parent=5 // pred_check_branch
      %221 = sbr.rel (%p218) target = $region12
    $region11: #{downsample_with_conv.1} parent=5 // pred_region
      %s222 = ssub.s32 %s12, 1
      // Predicated region
      $region13: #{downsample_with_conv.1} parent=11 // pred_check
        %p223 = pneg %p154
      $region14: #{downsample_with_conv.1} parent=11 // pred_check_branch
        %225 = sbr.rel (%p223) target = $region16
      $region15: #{downsample_with_conv.1} parent=11 // pred_region
        %p226 = scmp.lt.s32.totalorder %s22, 0
        %s227 = scalar_select %p226, %s22, 0
        %s228 = smul.addr %s227, 4
        %s229 = scalar_lea.vmem %s4, %s228
      $region16: #{downsample_with_conv.1} parent=11 // pred_fallthru
        _
      // Predicated region
      $region17: #{downsample_with_conv.1} parent=11 // pred_check
        %p230 = pneg %p180
      $region18: #{downsample_with_conv.1} parent=11 // pred_check_branch
        %232 = sbr.rel (%p230) target = $region20
      $region19: #{downsample_with_conv.1} parent=11 // pred_region
        %p233 = scmp.lt.s32.totalorder %s22, 0
        %s234 = scalar_select %p233, %s22, 0
        %s235 = scalar_lea.vmem %s5, %s234
      $region20: #{downsample_with_conv.1} parent=11 // pred_fallthru
        _
    $region12: #{downsample_with_conv.1} parent=5 // pred_fallthru
      _
    %p236 = scmp.lt.s32.totalorder %s12, 2
    // Predicated region
    $region21: #{downsample_with_conv.1} parent=5 // pred_check
      %p237 = pneg %p236
    $region22: #{downsample_with_conv.1} parent=5 // pred_check_branch
      %239 = sbr.rel (%p237) target = $region24
    $region23: #{downsample_with_conv.1} parent=5 // pred_region
      // Predicated region
      $region25: #{downsample_with_conv.1} parent=23 // pred_check
        %p240 = pneg %p44
      $region26: #{downsample_with_conv.1} parent=23 // pred_check_branch
        %242 = sbr.rel (%p240) target = $region28
      $region27: #{downsample_with_conv.1} parent=23 // pred_region
        %p243 = scmp.lt.s32.totalorder %s19, 1
        %s244 = scalar_select %p243, %s19, 1
        %s245 = smul.addr %s244, 18
        %s246 = smul.addr %s245, 8
        %s247 = scalar_lea.vmem %s0, %s246
      $region28: #{downsample_with_conv.1} parent=23 // pred_fallthru
        _
      // Predicated region
      $region29: #{downsample_with_conv.1} parent=23 // pred_check
        %p248 = pneg %p70
      $region30: #{downsample_with_conv.1} parent=23 // pred_check_branch
        %250 = sbr.rel (%p248) target = $region32
      $region31: #{downsample_with_conv.1} parent=23 // pred_region
        %p251 = scmp.lt.s32.totalorder %s19, 1
        %s252 = scalar_select %p251, %s19, 1
        %s253 = smul.addr %s252, 9
        %s254 = smul.addr %s253, 8
        %s255 = scalar_lea.vmem %s1, %s254
      $region32: #{downsample_with_conv.1} parent=23 // pred_fallthru
        _
      // Predicated region
      $region33: #{downsample_with_conv.1} parent=23 // pred_check
        %p256 = pneg %p96
      $region34: #{downsample_with_conv.1} parent=23 // pred_check_branch
        %258 = sbr.rel (%p256) target = $region36
      $region35: #{downsample_with_conv.1} parent=23 // pred_region
        %p259 = scmp.lt.s32.totalorder %s19, 1
        %s260 = scalar_select %p259, %s19, 1
        %s261 = smul.addr %s260, 16
        %s262 = smul.addr %s261, 8
        %s263 = scalar_lea.vmem %s2, %s262
      $region36: #{downsample_with_conv.1} parent=23 // pred_fallthru
        _
      // Predicated region
      $region37: #{downsample_with_conv.1} parent=23 // pred_check
        %p264 = pneg %p122
      $region38: #{downsample_with_conv.1} parent=23 // pred_check_branch
        %266 = sbr.rel (%p264) target = $region40
      $region39: #{downsample_with_conv.1} parent=23 // pred_region
        %p267 = scmp.lt.s32.totalorder %s19, 1
        %s268 = scalar_select %p267, %s19, 1
        %s269 = smul.addr %s268, 8
        %s270 = smul.addr %s269, 8
        %s271 = scalar_lea.vmem %s3, %s270
      $region40: #{downsample_with_conv.1} parent=23 // pred_fallthru
        _
    $region24: #{downsample_with_conv.1} parent=5 // pred_fallthru
      _
    %p272 = scmp.le.s32.totalorder 1, %s12
    %p273 = scmp.lt.s32.totalorder %s12, 3
    %p274 = pnand %p272, %p273
    %p275 = pneg %p274
    // Predicated region
    $region41: #{downsample_with_conv.1} parent=5 // pred_check
      _
    $region42: #{downsample_with_conv.1} parent=5 // pred_check_branch
      %277 = sbr.rel (%p274) target = $region44
    $region43: #{downsample_with_conv.1} parent=5 // pred_region
      %s278 = ssub.s32 %s12, 1
      %p279 = scmp.lt.s32.totalorder %s21, 1
      %s280 = scalar_select %p279, %s21, 1
      %s281 = smul.addr %s280, 18
      %s282 = smul.addr %s281, 8
      %s283 = scalar_lea.vmem %s0, %s282
      %p284 = pneg %p50
      %p285 = pneg %p47
      %p286 = scmp.lt.s32.totalorder %s21, 1
      %s287 = scalar_select %p286, %s21, 1
      %s288 = smul.addr %s287, 9
      %s289 = smul.addr %s288, 8
      %s290 = scalar_lea.vmem %s1, %s289
      %p291 = pneg %p76
      %p292 = pneg %p73
      %p293 = scmp.lt.s32.totalorder %s21, 1
      %s294 = scalar_select %p293, %s21, 1
      %s295 = smul.addr %s294, 16
      %s296 = smul.addr %s295, 8
      %s297 = scalar_lea.vmem %s2, %s296
      %p298 = pneg %p102
      %p299 = pneg %p99
      %p300 = scmp.lt.s32.totalorder %s21, 1
      %s301 = scalar_select %p300, %s21, 1
      %s302 = smul.addr %s301, 8
      %s303 = smul.addr %s302, 8
      %s304 = scalar_lea.vmem %s3, %s303
      %p305 = pneg %p128
      %p306 = pneg %p125
      %p307 = scmp.lt.s32.totalorder %s22, 0
      %s308 = scalar_select %p307, %s22, 0
      %s309 = smul.addr %s308, 4
      %s310 = scalar_lea.vmem %s4, %s309
      %p311 = pneg %p154
      %p312 = pneg %p151
      %p313 = scmp.lt.s32.totalorder %s22, 0
      %s314 = scalar_select %p313, %s22, 0
      %s315 = scalar_lea.vmem %s5, %s314
      %p316 = pneg %p180
      %p317 = pneg %p177
      %p318 = pneg %p208
      %p319 = pneg %p205
      %p320 = scmp.lt.s32.totalorder %s21, 1
      %s321 = scalar_select %p320, %s21, 1
      %p322 = scmp.lt.s32.totalorder %s22, 0
      %s323 = scalar_select %p322, %s22, 0
      %s324 = smul.addr %s321, 8
      %s325 = sadd.s32 %s323, %s324
      %s326 = smul.addr %s325, 8
      %s327 = scalar_lea.vmem %s6, %s326
      %p328 = scmp.lt.s32.totalorder %s21, 1
      %s329 = scalar_select %p328, %s21, 1
      %s330 = smul.addr %s329, 18
      %s331 = smul.addr %s330, 8
      %s332 = scalar_lea.vmem %s0, %s331
      %p333 = scmp.lt.s32.totalorder %s21, 1
      %s334 = scalar_select %p333, %s21, 1
      %s335 = smul.addr %s334, 9
      %s336 = smul.addr %s335, 8
      %s337 = scalar_lea.vmem %s1, %s336
      %p338 = scmp.lt.s32.totalorder %s21, 1
      %s339 = scalar_select %p338, %s21, 1
      %s340 = smul.addr %s339, 16
      %s341 = smul.addr %s340, 8
      %s342 = scalar_lea.vmem %s2, %s341
      %p343 = scmp.lt.s32.totalorder %s21, 1
      %s344 = scalar_select %p343, %s21, 1
      %s345 = smul.addr %s344, 8
      %s346 = smul.addr %s345, 8
      %s347 = scalar_lea.vmem %s3, %s346
      %p348 = scmp.lt.s32.totalorder %s22, 0
      %s349 = scalar_select %p348, %s22, 0
      %s350 = smul.addr %s349, 4
      %s351 = scalar_lea.vmem %s4, %s350
      %p352 = scmp.lt.s32.totalorder %s22, 0
      %s353 = scalar_select %p352, %s22, 0
      %s354 = scalar_lea.vmem %s5, %s353
      %p355 = scmp.lt.s32.totalorder %s21, 1
      %s356 = scalar_select %p355, %s21, 1
      %p357 = scmp.lt.s32.totalorder %s22, 0
      %s358 = scalar_select %p357, %s22, 0
      %s359 = smul.addr %s356, 8
      %s360 = sadd.s32 %s358, %s359
      %s361 = smul.addr %s360, 8
      %s362 = scalar_lea.vmem %s6, %s361
      %v363 = vld [vmem:[%s332] sm:$0xff]
      %v364 = vld [vmem:[%s332 + $0x10] sm:$0xff]
      %v365 = vld [vmem:[%s332 + $0x20] sm:$0xff]
      %v366 = vld [vmem:[%s332 + $0x30] sm:$0xff]
      %v367 = vld [vmem:[%s332 + $0x40] sm:$0xff]
      %v368 = vld [vmem:[%s332 + $0x50] sm:$0xff]
      %v369 = vld [vmem:[%s332 + $0x60] sm:$0xff]
      %v370 = vld [vmem:[%s332 + $0x70] sm:$0xff]
      %v371 = vld [vmem:[%s351] sm:$0xf]
      %v372 = vld [vmem:[%s337] sm:$0xff]
      %v373 = vld [vmem:[%s337 + $0x8] sm:$0xff]
      %v374 = vld [vmem:[%s337 + $0x10] sm:$0xff]
      %v375 = vld [vmem:[%s337 + $0x18] sm:$0xff]
      %v376 = vld [vmem:[%s337 + $0x20] sm:$0xff]
      %v377 = vld [vmem:[%s337 + $0x28] sm:$0xff]
      %v378 = vld [vmem:[%s337 + $0x30] sm:$0xff]
      %v379 = vld [vmem:[%s337 + $0x38] sm:$0xff]
      %s380 = scalar_lea.vmem %s351, 4
      %v381 = vld [vmem:[%s380] sm:$0xf]
      %vm382 = vcmask 31744
      %v384 = vsel %vm382, %v372, 0
      %v387 = vsel %vm382, %v373, 0
      %v390 = vsel %vm382, %v374, 0
      %v393 = vsel %vm382, %v375, 0
      %v396 = vsel %vm382, %v376, 0
      %v399 = vsel %vm382, %v377, 0
      %v402 = vsel %vm382, %v378, 0
      %v405 = vsel %vm382, %v379, 0
      %vm407 = vcmask 1043456
      %v409 = vsel %vm407, %v381, 0
      %411 = vmatprep.subr.mxu0 0.0
      %412 = vmatpush1.msra.mxu0 %v409
      %413 = vmatprep.subr.mxu0 0.0
      %414 = vmatpush1.msra.mxu0 0.0
      %415 = vmatprep.subr.mxu0 0.0
      %416 = vmatpush1.msra.mxu0 0.0
      %417 = vmatprep.subr.mxu0 0.0
      %418 = vmatpush1.msra.mxu0 0.0
      %419 = vmatprep.subr.mxu0 0.0
      %420 = vmatpush1.msra.mxu0 0.0
      %421 = vmatprep.subr.mxu0 0.0
      %422 = vmatpush1.msra.mxu0 0.0
      %423 = vmatprep.subr.mxu0 0.0
      %424 = vmatpush1.msra.mxu0 0.0
      %425 = vmatprep.subr.mxu0 0.0
      %426 = vmatpush1.msra.mxu0 0.0
      %427 = vmatprep.subr.mxu0 0.0
      %428 = vmatpush1.msra.mxu0 0.0
      %429 = vmatprep.subr.mxu0 0.0
      %430 = vmatpush1.msra.mxu0 0.0
      %431 = vmatprep.subr.mxu0 0.0
      %432 = vmatpush1.msra.mxu0 0.0
      %433 = vmatprep.subr.mxu0 0.0
      %434 = vmatpush1.msra.mxu0 0.0
      %435 = vmatprep.subr.mxu0 0.0
      %436 = vmatpush1.msra.mxu0 0.0
      %437 = vmatprep.subr.mxu0 0.0
      %438 = vmatpush1.msra.mxu0 0.0
      %439 = vmatprep.subr.mxu0 0.0
      %440 = vmatpush1.msra.mxu0 0.0
      %441 = vmatprep.subr.mxu0 0.0
      %442 = vmatpush1.msra.mxu0 0.0
      %443 = vmatprep.subr.mxu0 0.0
      %444 = vmatpush1.msra.mxu0 0.0
      %445 = vmatprep.subr.mxu0 0.0
      %446 = vmatpush1.msra.mxu0 0.0
      %447 = vmatprep.subr.mxu0 0.0
      %448 = vmatpush1.msra.mxu0 0.0
      %449 = vmatprep.subr.mxu0 0.0
      %450 = vmatpush1.msra.mxu0 0.0
      %451 = vmatprep.subr.mxu0 0.0
      %452 = vmatpush1.msra.mxu0 0.0
      %453 = vmatprep.subr.mxu0 0.0
      %454 = vmatpush1.msra.mxu0 0.0
      %455 = vmatprep.subr.mxu0 0.0
      %456 = vmatpush1.msra.mxu0 0.0
      %457 = vmatprep.subr.mxu0 0.0
      %458 = vmatpush1.msra.mxu0 0.0
      %459 = vmatprep.subr.mxu0 0.0
      %460 = vmatpush1.msra.mxu0 0.0
      %461 = vmatprep.subr.mxu0 0.0
      %462 = vmatpush1.msra.mxu0 0.0
      %463 = vmatprep.subr.mxu0 0.0
      %464 = vmatpush1.msra.mxu0 0.0
      %465 = vmatprep.subr.mxu0 0.0
      %466 = vmatpush1.msra.mxu0 0.0
      %467 = vmatprep.subr.mxu0 0.0
      %468 = vmatpush1.msra.mxu0 0.0
      %469 = vmatprep.subr.mxu0 0.0
      %470 = vmatpush1.msra.mxu0 0.0
      %471 = vmatprep.subr.mxu0 0.0
      %472 = vmatpush1.msra.mxu0 0.0
      %473 = vmatprep.subr.mxu0 0.0
      %474 = vmatpush1.msra.mxu0 0.0
      %475 = vmatprep.mubr.f32.mxu0 0.0
      %476 = vmatmul.mubr.f32.gmra.mrb[0].mxu0 %v384
      %v477 = vpop.f32.mrb[0].mxu0
      %v478 = vadd.f32 0.0, %v477
      %v479 = vpop.f32.mrb[0].mxu0
      %480 = vmatprep.mubr.f32.mxu0 0.0
      %481 = vmatmul.mubr.f32.gmra.mrb[0].mxu0 %v387
      %v482 = vpop.f32.mrb[0].mxu0
      %v483 = vadd.f32 0.0, %v482
      %v484 = vpop.f32.mrb[0].mxu0
      %485 = vmatprep.mubr.f32.mxu0 0.0
      %486 = vmatmul.mubr.f32.gmra.mrb[0].mxu0 %v390
      %v487 = vpop.f32.mrb[0].mxu0
      %v488 = vadd.f32 0.0, %v487
      %v489 = vpop.f32.mrb[0].mxu0
      %490 = vmatprep.mubr.f32.mxu0 0.0
      %491 = vmatmul.mubr.f32.gmra.mrb[0].mxu0 %v393
      %v492 = vpop.f32.mrb[0].mxu0
      %v493 = vadd.f32 0.0, %v492
      %v494 = vpop.f32.mrb[0].mxu0
      %495 = vmatprep.mubr.f32.mxu0 0.0
      %496 = vmatmul.mubr.f32.gmra.mrb[0].mxu0 %v396
      %v497 = vpop.f32.mrb[0].mxu0
      %v498 = vadd.f32 0.0, %v497
      %v499 = vpop.f32.mrb[0].mxu0
      %500 = vmatprep.mubr.f32.mxu0 0.0
      %501 = vmatmul.mubr.f32.gmra.mrb[0].mxu0 %v399
      %v502 = vpop.f32.mrb[0].mxu0
      %v503 = vadd.f32 0.0, %v502
      %v504 = vpop.f32.mrb[0].mxu0
      %505 = vmatprep.mubr.f32.mxu0 0.0
      %506 = vmatmul.mubr.f32.gmra.mrb[0].mxu0 %v402
      %v507 = vpop.f32.mrb[0].mxu0
      %v508 = vadd.f32 0.0, %v507
      %v509 = vpop.f32.mrb[0].mxu0
      %510 = vmatprep.mubr.f32.mxu0 0.0
      %511 = vmatmul.mubr.f32.gmra.mrb[0].mxu0 %v405
      %v512 = vpop.f32.mrb[0].mxu0
      %v513 = vadd.f32 0.0, %v512
      %v514 = vpop.f32.mrb[0].mxu0
      %515 = vdwg.mxu0
      %v517 = vsel %vm382, %v363, 0
      %v520 = vsel %vm382, %v364, 0
      %v523 = vsel %vm382, %v365, 0
      %v526 = vsel %vm382, %v366, 0
      %v529 = vsel %vm382, %v367, 0
      %v532 = vsel %vm382, %v368, 0
      %v535 = vsel %vm382, %v369, 0
      %v538 = vsel %vm382, %v370, 0
      %v541 = vsel %vm407, %v371, 0
      %543 = vmatprep.subr.mxu0 0.0
      %544 = vmatpush1.msra.mxu0 %v541
      %545 = vmatprep.subr.mxu0 0.0
      %546 = vmatpush1.msra.mxu0 0.0
      %547 = vmatprep.subr.mxu0 0.0
      %548 = vmatpush1.msra.mxu0 0.0
      %549 = vmatprep.subr.mxu0 0.0
      %550 = vmatpush1.msra.mxu0 0.0
      %551 = vmatprep.subr.mxu0 0.0
      %552 = vmatpush1.msra.mxu0 0.0
      %553 = vmatprep.subr.mxu0 0.0
      %554 = vmatpush1.msra.mxu0 0.0
      %555 = vmatprep.subr.mxu0 0.0
      %556 = vmatpush1.msra.mxu0 0.0
      %557 = vmatprep.subr.mxu0 0.0
      %558 = vmatpush1.msra.mxu0 0.0
      %559 = vmatprep.subr.mxu0 0.0
      %560 = vmatpush1.msra.mxu0 0.0
      %561 = vmatprep.subr.mxu0 0.0
      %562 = vmatpush1.msra.mxu0 0.0
      %563 = vmatprep.subr.mxu0 0.0
      %564 = vmatpush1.msra.mxu0 0.0
      %565 = vmatprep.subr.mxu0 0.0
      %566 = vmatpush1.msra.mxu0 0.0
      %567 = vmatprep.subr.mxu0 0.0
      %568 = vmatpush1.msra.mxu0 0.0
      %569 = vmatprep.subr.mxu0 0.0
      %570 = vmatpush1.msra.mxu0 0.0
      %571 = vmatprep.subr.mxu0 0.0
      %572 = vmatpush1.msra.mxu0 0.0
      %573 = vmatprep.subr.mxu0 0.0
      %574 = vmatpush1.msra.mxu0 0.0
      %575 = vmatprep.subr.mxu0 0.0
      %576 = vmatpush1.msra.mxu0 0.0
      %577 = vmatprep.subr.mxu0 0.0
      %578 = vmatpush1.msra.mxu0 0.0
      %579 = vmatprep.subr.mxu0 0.0
      %580 = vmatpush1.msra.mxu0 0.0
      %581 = vmatprep.subr.mxu0 0.0
      %582 = vmatpush1.msra.mxu0 0.0
      %583 = vmatprep.subr.mxu0 0.0
      %584 = vmatpush1.msra.mxu0 0.0
      %585 = vmatprep.subr.mxu0 0.0
      %586 = vmatpush1.msra.mxu0 0.0
      %587 = vmatprep.subr.mxu0 0.0
      %588 = vmatpush1.msra.mxu0 0.0
      %589 = vmatprep.subr.mxu0 0.0
      %590 = vmatpush1.msra.mxu0 0.0
      %591 = vmatprep.subr.mxu0 0.0
      %592 = vmatpush1.msra.mxu0 0.0
      %593 = vmatprep.subr.mxu0 0.0
      %594 = vmatpush1.msra.mxu0 0.0
      %595 = vmatprep.subr.mxu0 0.0
      %596 = vmatpush1.msra.mxu0 0.0
      %597 = vmatprep.subr.mxu0 0.0
      %598 = vmatpush1.msra.mxu0 0.0
      %599 = vmatprep.subr.mxu0 0.0
      %600 = vmatpush1.msra.mxu0 0.0
      %601 = vmatprep.subr.mxu0 0.0
      %602 = vmatpush1.msra.mxu0 0.0
      %603 = vmatprep.subr.mxu0 0.0
      %604 = vmatpush1.msra.mxu0 0.0
      %605 = vmatprep.subr.mxu0 0.0
      %606 = vmatpush1.msra.mxu0 0.0
      %607 = vmatprep.mubr.f32.mxu0 0.0
      %608 = vmatmul.mubr.f32.gmra.mrb[0].mxu0 %v517
      %v609 = vpop.f32.mrb[0].mxu0
      %v610 = vadd.f32 %v478, %v609
      %v611 = vpop.f32.mrb[0].mxu0
      %612 = vmatprep.mubr.f32.mxu0 0.0
      %613 = vmatmul.mubr.f32.gmra.mrb[0].mxu0 %v520
      %v614 = vpop.f32.mrb[0].mxu0
      %v615 = vadd.f32 %v483, %v614
      %v616 = vpop.f32.mrb[0].mxu0
      %617 = vmatprep.mubr.f32.mxu0 0.0
      %618 = vmatmul.mubr.f32.gmra.mrb[0].mxu0 %v523
      %v619 = vpop.f32.mrb[0].mxu0
      %v620 = vadd.f32 %v488, %v619
      %v621 = vpop.f32.mrb[0].mxu0
      %622 = vmatprep.mubr.f32.mxu0 0.0
      %623 = vmatmul.mubr.f32.gmra.mrb[0].mxu0 %v526
      %v624 = vpop.f32.mrb[0].mxu0
      %v625 = vadd.f32 %v493, %v624
      %v626 = vpop.f32.mrb[0].mxu0
      %627 = vmatprep.mubr.f32.mxu0 0.0
      %628 = vmatmul.mubr.f32.gmra.mrb[0].mxu0 %v529
      %v629 = vpop.f32.mrb[0].mxu0
      %v630 = vadd.f32 %v498, %v629
      %v631 = vpop.f32.mrb[0].mxu0
      %632 = vmatprep.mubr.f32.mxu0 0.0
      %633 = vmatmul.mubr.f32.gmra.mrb[0].mxu0 %v532
      %v634 = vpop.f32.mrb[0].mxu0
      %v635 = vadd.f32 %v503, %v634
      %v636 = vpop.f32.mrb[0].mxu0
      %637 = vmatprep.mubr.f32.mxu0 0.0
      %638 = vmatmul.mubr.f32.gmra.mrb[0].mxu0 %v535
      %v639 = vpop.f32.mrb[0].mxu0
      %v640 = vadd.f32 %v508, %v639
      %v641 = vpop.f32.mrb[0].mxu0
      %642 = vmatprep.mubr.f32.mxu0 0.0
      %643 = vmatmul.mubr.f32.gmra.mrb[0].mxu0 %v538
      %v644 = vpop.f32.mrb[0].mxu0
      %v645 = vadd.f32 %v513, %v644
      %v646 = vpop.f32.mrb[0].mxu0
      %647 = vdwg.mxu0
      %v648 = vld [vmem:[%s332 + $0x1] sm:$0xff]
      %v649 = vld [vmem:[%s332 + $0x11] sm:$0xff]
      %v650 = vld [vmem:[%s332 + $0x21] sm:$0xff]
      %v651 = vld [vmem:[%s332 + $0x31] sm:$0xff]
      %v652 = vld [vmem:[%s332 + $0x41] sm:$0xff]
      %v653 = vld [vmem:[%s332 + $0x51] sm:$0xff]
      %v654 = vld [vmem:[%s332 + $0x61] sm:$0xff]
      %v655 = vld [vmem:[%s332 + $0x71] sm:$0xff]
      %s656 = scalar_lea.vmem %s351, 8
      %v657 = vld [vmem:[%s656] sm:$0xf]
      %v659 = vsel %vm382, %v648, 0
      %v662 = vsel %vm382, %v649, 0
      %v665 = vsel %vm382, %v650, 0
      %v668 = vsel %vm382, %v651, 0
      %v671 = vsel %vm382, %v652, 0
      %v674 = vsel %vm382, %v653, 0
      %v677 = vsel %vm382, %v654, 0
      %v680 = vsel %vm382, %v655, 0
      %v683 = vsel %vm407, %v657, 0
      %685 = vmatprep.subr.mxu0 0.0
      %686 = vmatpush1.msra.mxu0 %v683
      %687 = vmatprep.subr.mxu0 0.0
      %688 = vmatpush1.msra.mxu0 0.0
      %689 = vmatprep.subr.mxu0 0.0
      %690 = vmatpush1.msra.mxu0 0.0
      %691 = vmatprep.subr.mxu0 0.0
      %692 = vmatpush1.msra.mxu0 0.0
      %693 = vmatprep.subr.mxu0 0.0
      %694 = vmatpush1.msra.mxu0 0.0
      %695 = vmatprep.subr.mxu0 0.0
      %696 = vmatpush1.msra.mxu0 0.0
      %697 = vmatprep.subr.mxu0 0.0
      %698 = vmatpush1.msra.mxu0 0.0
      %699 = vmatprep.subr.mxu0 0.0
      %700 = vmatpush1.msra.mxu0 0.0
      %701 = vmatprep.subr.mxu0 0.0
      %702 = vmatpush1.msra.mxu0 0.0
      %703 = vmatprep.subr.mxu0 0.0
      %704 = vmatpush1.msra.mxu0 0.0
      %705 = vmatprep.subr.mxu0 0.0
      %706 = vmatpush1.msra.mxu0 0.0
      %707 = vmatprep.subr.mxu0 0.0
      %708 = vmatpush1.msra.mxu0 0.0
      %709 = vmatprep.subr.mxu0 0.0
      %710 = vmatpush1.msra.mxu0 0.0
      %711 = vmatprep.subr.mxu0 0.0
      %712 = vmatpush1.msra.mxu0 0.0
      %713 = vmatprep.subr.mxu0 0.0
      %714 = vmatpush1.msra.mxu0 0.0
      %715 = vmatprep.subr.mxu0 0.0
      %716 = vmatpush1.msra.mxu0 0.0
      %717 = vmatprep.subr.mxu0 0.0
      %718 = vmatpush1.msra.mxu0 0.0
      %719 = vmatprep.subr.mxu0 0.0
      %720 = vmatpush1.msra.mxu0 0.0
      %721 = vmatprep.subr.mxu0 0.0
      %722 = vmatpush1.msra.mxu0 0.0
      %723 = vmatprep.subr.mxu0 0.0
      %724 = vmatpush1.msra.mxu0 0.0
      %725 = vmatprep.subr.mxu0 0.0
      %726 = vmatpush1.msra.mxu0 0.0
      %727 = vmatprep.subr.mxu0 0.0
      %728 = vmatpush1.msra.mxu0 0.0
      %729 = vmatprep.subr.mxu0 0.0
      %730 = vmatpush1.msra.mxu0 0.0
      %731 = vmatprep.subr.mxu0 0.0
      %732 = vmatpush1.msra.mxu0 0.0
      %733 = vmatprep.subr.mxu0 0.0
      %734 = vmatpush1.msra.mxu0 0.0
      %735 = vmatprep.subr.mxu0 0.0
      %736 = vmatpush1.msra.mxu0 0.0
      %737 = vmatprep.subr.mxu0 0.0
      %738 = vmatpush1.msra.mxu0 0.0
      %739 = vmatprep.subr.mxu0 0.0
      %740 = vmatpush1.msra.mxu0 0.0
      %741 = vmatprep.subr.mxu0 0.0
      %742 = vmatpush1.msra.mxu0 0.0
      %743 = vmatprep.subr.mxu0 0.0
      %744 = vmatpush1.msra.mxu0 0.0
      %745 = vmatprep.subr.mxu0 0.0
      %746 = vmatpush1.msra.mxu0 0.0
      %747 = vmatprep.subr.mxu0 0.0
      %748 = vmatpush1.msra.mxu0 0.0
      %749 = vmatprep.mubr.f32.mxu0 0.0
      %750 = vmatmul.mubr.f32.gmra.mrb[0].mxu0 %v659
      %v751 = vpop.f32.mrb[0].mxu0
      %v752 = vadd.f32 0.0, %v751
      %v753 = vpop.f32.mrb[0].mxu0
      %754 = vmatprep.mubr.f32.mxu0 0.0
      %755 = vmatmul.mubr.f32.gmra.mrb[0].mxu0 %v662
      %v756 = vpop.f32.mrb[0].mxu0
      %v757 = vadd.f32 0.0, %v756
      %v758 = vpop.f32.mrb[0].mxu0
      %759 = vmatprep.mubr.f32.mxu0 0.0
      %760 = vmatmul.mubr.f32.gmra.mrb[0].mxu0 %v665
      %v761 = vpop.f32.mrb[0].mxu0
      %v762 = vadd.f32 0.0, %v761
      %v763 = vpop.f32.mrb[0].mxu0
      %764 = vmatprep.mubr.f32.mxu0 0.0
      %765 = vmatmul.mubr.f32.gmra.mrb[0].mxu0 %v668
      %v766 = vpop.f32.mrb[0].mxu0
      %v767 = vadd.f32 0.0, %v766
      %v768 = vpop.f32.mrb[0].mxu0
      %769 = vmatprep.mubr.f32.mxu0 0.0
      %770 = vmatmul.mubr.f32.gmra.mrb[0].mxu0 %v671
      %v771 = vpop.f32.mrb[0].mxu0
      %v772 = vadd.f32 0.0, %v771
      %v773 = vpop.f32.mrb[0].mxu0
      %774 = vmatprep.mubr.f32.mxu0 0.0
      %775 = vmatmul.mubr.f32.gmra.mrb[0].mxu0 %v674
      %v776 = vpop.f32.mrb[0].mxu0
      %v777 = vadd.f32 0.0, %v776
      %v778 = vpop.f32.mrb[0].mxu0
      %779 = vmatprep.mubr.f32.mxu0 0.0
      %780 = vmatmul.mubr.f32.gmra.mrb[0].mxu0 %v677
      %v781 = vpop.f32.mrb[0].mxu0
      %v782 = vadd.f32 0.0, %v781
      %v783 = vpop.f32.mrb[0].mxu0
      %784 = vmatprep.mubr.f32.mxu0 0.0
      %785 = vmatmul.mubr.f32.gmra.mrb[0].mxu0 %v680
      %v786 = vpop.f32.mrb[0].mxu0
      %v787 = vadd.f32 0.0, %v786
      %v788 = vpop.f32.mrb[0].mxu0
      %789 = vdwg.mxu0
      %v790 = vadd.f32 %v610, %v752
      %v791 = vadd.f32 %v615, %v757
      %v792 = vadd.f32 %v620, %v762
      %v793 = vadd.f32 %v625, %v767
      %v794 = vadd.f32 %v630, %v772
      %v795 = vadd.f32 %v635, %v777
      %v796 = vadd.f32 %v640, %v782
      %v797 = vadd.f32 %v645, %v787
      %v798 = vld [vmem:[%s342] sm:$0xff]
      %v799 = vld [vmem:[%s342 + $0x10] sm:$0xff]
      %v800 = vld [vmem:[%s342 + $0x20] sm:$0xff]
      %v801 = vld [vmem:[%s342 + $0x30] sm:$0xff]
      %v802 = vld [vmem:[%s342 + $0x40] sm:$0xff]
      %v803 = vld [vmem:[%s342 + $0x50] sm:$0xff]
      %v804 = vld [vmem:[%s342 + $0x60] sm:$0xff]
      %v805 = vld [vmem:[%s342 + $0x70] sm:$0xff]
      %s806 = scalar_lea.vmem %s351, 12
      %v807 = vld [vmem:[%s806] sm:$0xf]
      %v809 = vsel %vm382, %v798, 0
      %v812 = vsel %vm382, %v799, 0
      %v815 = vsel %vm382, %v800, 0
      %v818 = vsel %vm382, %v801, 0
      %v821 = vsel %vm382, %v802, 0
      %v824 = vsel %vm382, %v803, 0
      %v827 = vsel %vm382, %v804, 0
      %v830 = vsel %vm382, %v805, 0
      %v833 = vsel %vm407, %v807, 0
      %835 = vmatprep.subr.mxu0 0.0
      %836 = vmatpush1.msra.mxu0 %v833
      %837 = vmatprep.subr.mxu0 0.0
      %838 = vmatpush1.msra.mxu0 0.0
      %839 = vmatprep.subr.mxu0 0.0
      %840 = vmatpush1.msra.mxu0 0.0
      %841 = vmatprep.subr.mxu0 0.0
      %842 = vmatpush1.msra.mxu0 0.0
      %843 = vmatprep.subr.mxu0 0.0
      %844 = vmatpush1.msra.mxu0 0.0
      %845 = vmatprep.subr.mxu0 0.0
      %846 = vmatpush1.msra.mxu0 0.0
      %847 = vmatprep.subr.mxu0 0.0
      %848 = vmatpush1.msra.mxu0 0.0
      %849 = vmatprep.subr.mxu0 0.0
      %850 = vmatpush1.msra.mxu0 0.0
      %851 = vmatprep.subr.mxu0 0.0
      %852 = vmatpush1.msra.mxu0 0.0
      %853 = vmatprep.subr.mxu0 0.0
      %854 = vmatpush1.msra.mxu0 0.0
      %855 = vmatprep.subr.mxu0 0.0
      %856 = vmatpush1.msra.mxu0 0.0
      %857 = vmatprep.subr.mxu0 0.0
      %858 = vmatpush1.msra.mxu0 0.0
      %859 = vmatprep.subr.mxu0 0.0
      %860 = vmatpush1.msra.mxu0 0.0
      %861 = vmatprep.subr.mxu0 0.0
      %862 = vmatpush1.msra.mxu0 0.0
      %863 = vmatprep.subr.mxu0 0.0
      %864 = vmatpush1.msra.mxu0 0.0
      %865 = vmatprep.subr.mxu0 0.0
      %866 = vmatpush1.msra.mxu0 0.0
      %867 = vmatprep.subr.mxu0 0.0
      %868 = vmatpush1.msra.mxu0 0.0
      %869 = vmatprep.subr.mxu0 0.0
      %870 = vmatpush1.msra.mxu0 0.0
      %871 = vmatprep.subr.mxu0 0.0
      %872 = vmatpush1.msra.mxu0 0.0
      %873 = vmatprep.subr.mxu0 0.0
      %874 = vmatpush1.msra.mxu0 0.0
      %875 = vmatprep.subr.mxu0 0.0
      %876 = vmatpush1.msra.mxu0 0.0
      %877 = vmatprep.subr.mxu0 0.0
      %878 = vmatpush1.msra.mxu0 0.0
      %879 = vmatprep.subr.mxu0 0.0
      %880 = vmatpush1.msra.mxu0 0.0
      %881 = vmatprep.subr.mxu0 0.0
      %882 = vmatpush1.msra.mxu0 0.0
      %883 = vmatprep.subr.mxu0 0.0
      %884 = vmatpush1.msra.mxu0 0.0
      %885 = vmatprep.subr.mxu0 0.0
      %886 = vmatpush1.msra.mxu0 0.0
      %887 = vmatprep.subr.mxu0 0.0
      %888 = vmatpush1.msra.mxu0 0.0
      %889 = vmatprep.subr.mxu0 0.0
      %890 = vmatpush1.msra.mxu0 0.0
      %891 = vmatprep.subr.mxu0 0.0
      %892 = vmatpush1.msra.mxu0 0.0
      %893 = vmatprep.subr.mxu0 0.0
      %894 = vmatpush1.msra.mxu0 0.0
      %895 = vmatprep.subr.mxu0 0.0
      %896 = vmatpush1.msra.mxu0 0.0
      %897 = vmatprep.subr.mxu0 0.0
      %898 = vmatpush1.msra.mxu0 0.0
      %899 = vmatprep.mubr.f32.mxu0 0.0
      %900 = vmatmul.mubr.f32.gmra.mrb[0].mxu0 %v809
      %v901 = vpop.f32.mrb[0].mxu0
      %v902 = vadd.f32 0.0, %v901
      %v903 = vpop.f32.mrb[0].mxu0
      %904 = vmatprep.mubr.f32.mxu0 0.0
      %905 = vmatmul.mubr.f32.gmra.mrb[0].mxu0 %v812
      %v906 = vpop.f32.mrb[0].mxu0
      %v907 = vadd.f32 0.0, %v906
      %v908 = vpop.f32.mrb[0].mxu0
      %909 = vmatprep.mubr.f32.mxu0 0.0
      %910 = vmatmul.mubr.f32.gmra.mrb[0].mxu0 %v815
      %v911 = vpop.f32.mrb[0].mxu0
      %v912 = vadd.f32 0.0, %v911
      %v913 = vpop.f32.mrb[0].mxu0
      %914 = vmatprep.mubr.f32.mxu0 0.0
      %915 = vmatmul.mubr.f32.gmra.mrb[0].mxu0 %v818
      %v916 = vpop.f32.mrb[0].mxu0
      %v917 = vadd.f32 0.0, %v916
      %v918 = vpop.f32.mrb[0].mxu0
      %919 = vmatprep.mubr.f32.mxu0 0.0
      %920 = vmatmul.mubr.f32.gmra.mrb[0].mxu0 %v821
      %v921 = vpop.f32.mrb[0].mxu0
      %v922 = vadd.f32 0.0, %v921
      %v923 = vpop.f32.mrb[0].mxu0
      %924 = vmatprep.mubr.f32.mxu0 0.0
      %925 = vmatmul.mubr.f32.gmra.mrb[0].mxu0 %v824
      %v926 = vpop.f32.mrb[0].mxu0
      %v927 = vadd.f32 0.0, %v926
      %v928 = vpop.f32.mrb[0].mxu0
      %929 = vmatprep.mubr.f32.mxu0 0.0
      %930 = vmatmul.mubr.f32.gmra.mrb[0].mxu0 %v827
      %v931 = vpop.f32.mrb[0].mxu0
      %v932 = vadd.f32 0.0, %v931
      %v933 = vpop.f32.mrb[0].mxu0
      %934 = vmatprep.mubr.f32.mxu0 0.0
      %935 = vmatmul.mubr.f32.gmra.mrb[0].mxu0 %v830
      %v936 = vpop.f32.mrb[0].mxu0
      %v937 = vadd.f32 0.0, %v936
      %v938 = vpop.f32.mrb[0].mxu0
      %939 = vdwg.mxu0
      %v940 = vadd.f32 %v790, %v902
      %v941 = vadd.f32 %v791, %v907
      %v942 = vadd.f32 %v792, %v912
      %v943 = vadd.f32 %v793, %v917
      %v944 = vadd.f32 %v794, %v922
      %v945 = vadd.f32 %v795, %v927
      %v946 = vadd.f32 %v796, %v932
      %v947 = vadd.f32 %v797, %v937
      %v948 = vld [vmem:[%s347] sm:$0xff]
      %v949 = vld [vmem:[%s347 + $0x8] sm:$0xff]
      %v950 = vld [vmem:[%s347 + $0x10] sm:$0xff]
      %v951 = vld [vmem:[%s347 + $0x18] sm:$0xff]
      %v952 = vld [vmem:[%s347 + $0x20] sm:$0xff]
      %v953 = vld [vmem:[%s347 + $0x28] sm:$0xff]
      %v954 = vld [vmem:[%s347 + $0x30] sm:$0xff]
      %v955 = vld [vmem:[%s347 + $0x38] sm:$0xff]
      %s956 = scalar_lea.vmem %s351, 16
      %v957 = vld [vmem:[%s956] sm:$0xf]
      %v959 = vsel %vm382, %v948, 0
      %v962 = vsel %vm382, %v949, 0
      %v965 = vsel %vm382, %v950, 0
      %v968 = vsel %vm382, %v951, 0
      %v971 = vsel %vm382, %v952, 0
      %v974 = vsel %vm382, %v953, 0
      %v977 = vsel %vm382, %v954, 0
      %v980 = vsel %vm382, %v955, 0
      %v983 = vsel %vm407, %v957, 0
      %985 = vmatprep.subr.mxu0 0.0
      %986 = vmatpush1.msra.mxu0 %v983
      %987 = vmatprep.subr.mxu0 0.0
      %988 = vmatpush1.msra.mxu0 0.0
      %989 = vmatprep.subr.mxu0 0.0
      %990 = vmatpush1.msra.mxu0 0.0
      %991 = vmatprep.subr.mxu0 0.0
      %992 = vmatpush1.msra.mxu0 0.0
      %993 = vmatprep.subr.mxu0 0.0
      %994 = vmatpush1.msra.mxu0 0.0
      %995 = vmatprep.subr.mxu0 0.0
      %996 = vmatpush1.msra.mxu0 0.0
      %997 = vmatprep.subr.mxu0 0.0
      %998 = vmatpush1.msra.mxu0 0.0
      %999 = vmatprep.subr.mxu0 0.0
      %1000 = vmatpush1.msra.mxu0 0.0
      %1001 = vmatprep.subr.mxu0 0.0
      %1002 = vmatpush1.msra.mxu0 0.0
      %1003 = vmatprep.subr.mxu0 0.0
      %1004 = vmatpush1.msra.mxu0 0.0
      %1005 = vmatprep.subr.mxu0 0.0
      %1006 = vmatpush1.msra.mxu0 0.0
      %1007 = vmatprep.subr.mxu0 0.0
      %1008 = vmatpush1.msra.mxu0 0.0
      %1009 = vmatprep.subr.mxu0 0.0
      %1010 = vmatpush1.msra.mxu0 0.0
      %1011 = vmatprep.subr.mxu0 0.0
      %1012 = vmatpush1.msra.mxu0 0.0
      %1013 = vmatprep.subr.mxu0 0.0
      %1014 = vmatpush1.msra.mxu0 0.0
      %1015 = vmatprep.subr.mxu0 0.0
      %1016 = vmatpush1.msra.mxu0 0.0
      %1017 = vmatprep.subr.mxu0 0.0
      %1018 = vmatpush1.msra.mxu0 0.0
      %1019 = vmatprep.subr.mxu0 0.0
      %1020 = vmatpush1.msra.mxu0 0.0
      %1021 = vmatprep.subr.mxu0 0.0
      %1022 = vmatpush1.msra.mxu0 0.0
      %1023 = vmatprep.subr.mxu0 0.0
      %1024 = vmatpush1.msra.mxu0 0.0
      %1025 = vmatprep.subr.mxu0 0.0
      %1026 = vmatpush1.msra.mxu0 0.0
      %1027 = vmatprep.subr.mxu0 0.0
      %1028 = vmatpush1.msra.mxu0 0.0
      %1029 = vmatprep.subr.mxu0 0.0
      %1030 = vmatpush1.msra.mxu0 0.0
      %1031 = vmatprep.subr.mxu0 0.0
      %1032 = vmatpush1.msra.mxu0 0.0
      %1033 = vmatprep.subr.mxu0 0.0
      %1034 = vmatpush1.msra.mxu0 0.0
      %1035 = vmatprep.subr.mxu0 0.0
      %1036 = vmatpush1.msra.mxu0 0.0
      %1037 = vmatprep.subr.mxu0 0.0
      %1038 = vmatpush1.msra.mxu0 0.0
      %1039 = vmatprep.subr.mxu0 0.0
      %1040 = vmatpush1.msra.mxu0 0.0
      %1041 = vmatprep.subr.mxu0 0.0
      %1042 = vmatpush1.msra.mxu0 0.0
      %1043 = vmatprep.subr.mxu0 0.0
      %1044 = vmatpush1.msra.mxu0 0.0
      %1045 = vmatprep.subr.mxu0 0.0
      %1046 = vmatpush1.msra.mxu0 0.0
      %1047 = vmatprep.subr.mxu0 0.0
      %1048 = vmatpush1.msra.mxu0 0.0
      %1049 = vmatprep.mubr.f32.mxu0 0.0
      %1050 = vmatmul.mubr.f32.gmra.mrb[0].mxu0 %v959
      %v1051 = vpop.f32.mrb[0].mxu0
      %v1052 = vadd.f32 0.0, %v1051
      %v1053 = vpop.f32.mrb[0].mxu0
      %1054 = vmatprep.mubr.f32.mxu0 0.0
      %1055 = vmatmul.mubr.f32.gmra.mrb[0].mxu0 %v962
      %v1056 = vpop.f32.mrb[0].mxu0
      %v1057 = vadd.f32 0.0, %v1056
      %v1058 = vpop.f32.mrb[0].mxu0
      %1059 = vmatprep.mubr.f32.mxu0 0.0
      %1060 = vmatmul.mubr.f32.gmra.mrb[0].mxu0 %v965
      %v1061 = vpop.f32.mrb[0].mxu0
      %v1062 = vadd.f32 0.0, %v1061
      %v1063 = vpop.f32.mrb[0].mxu0
      %1064 = vmatprep.mubr.f32.mxu0 0.0
      %1065 = vmatmul.mubr.f32.gmra.mrb[0].mxu0 %v968
      %v1066 = vpop.f32.mrb[0].mxu0
      %v1067 = vadd.f32 0.0, %v1066
      %v1068 = vpop.f32.mrb[0].mxu0
      %1069 = vmatprep.mubr.f32.mxu0 0.0
      %1070 = vmatmul.mubr.f32.gmra.mrb[0].mxu0 %v971
      %v1071 = vpop.f32.mrb[0].mxu0
      %v1072 = vadd.f32 0.0, %v1071
      %v1073 = vpop.f32.mrb[0].mxu0
      %1074 = vmatprep.mubr.f32.mxu0 0.0
      %1075 = vmatmul.mubr.f32.gmra.mrb[0].mxu0 %v974
      %v1076 = vpop.f32.mrb[0].mxu0
      %v1077 = vadd.f32 0.0, %v1076
      %v1078 = vpop.f32.mrb[0].mxu0
      %1079 = vmatprep.mubr.f32.mxu0 0.0
      %1080 = vmatmul.mubr.f32.gmra.mrb[0].mxu0 %v977
      %v1081 = vpop.f32.mrb[0].mxu0
      %v1082 = vadd.f32 0.0, %v1081
      %v1083 = vpop.f32.mrb[0].mxu0
      %1084 = vmatprep.mubr.f32.mxu0 0.0
      %1085 = vmatmul.mubr.f32.gmra.mrb[0].mxu0 %v980
      %v1086 = vpop.f32.mrb[0].mxu0
      %v1087 = vadd.f32 0.0, %v1086
      %v1088 = vpop.f32.mrb[0].mxu0
      %1089 = vdwg.mxu0
      %v1090 = vadd.f32 %v940, %v1052
      %v1091 = vadd.f32 %v941, %v1057
      %v1092 = vadd.f32 %v942, %v1062
      %v1093 = vadd.f32 %v943, %v1067
      %v1094 = vadd.f32 %v944, %v1072
      %v1095 = vadd.f32 %v945, %v1077
      %v1096 = vadd.f32 %v946, %v1082
      %v1097 = vadd.f32 %v947, %v1087
      %v1098 = vld [vmem:[%s342 + $0x1] sm:$0xff]
      %v1099 = vld [vmem:[%s342 + $0x11] sm:$0xff]
      %v1100 = vld [vmem:[%s342 + $0x21] sm:$0xff]
      %v1101 = vld [vmem:[%s342 + $0x31] sm:$0xff]
      %v1102 = vld [vmem:[%s342 + $0x41] sm:$0xff]
      %v1103 = vld [vmem:[%s342 + $0x51] sm:$0xff]
      %v1104 = vld [vmem:[%s342 + $0x61] sm:$0xff]
      %v1105 = vld [vmem:[%s342 + $0x71] sm:$0xff]
      %s1106 = scalar_lea.vmem %s351, 20
      %v1107 = vld [vmem:[%s1106] sm:$0xf]
      %v1109 = vsel %vm382, %v1098, 0
      %v1112 = vsel %vm382, %v1099, 0
      %v1115 = vsel %vm382, %v1100, 0
      %v1118 = vsel %vm382, %v1101, 0
      %v1121 = vsel %vm382, %v1102, 0
      %v1124 = vsel %vm382, %v1103, 0
      %v1127 = vsel %vm382, %v1104, 0
      %v1130 = vsel %vm382, %v1105, 0
      %v1133 = vsel %vm407, %v1107, 0
      %1135 = vmatprep.subr.mxu0 0.0
      %1136 = vmatpush1.msra.mxu0 %v1133
      %1137 = vmatprep.subr.mxu0 0.0
      %1138 = vmatpush1.msra.mxu0 0.0
      %1139 = vmatprep.subr.mxu0 0.0
      %1140 = vmatpush1.msra.mxu0 0.0
      %1141 = vmatprep.subr.mxu0 0.0
      %1142 = vmatpush1.msra.mxu0 0.0
      %1143 = vmatprep.subr.mxu0 0.0
      %1144 = vmatpush1.msra.mxu0 0.0
      %1145 = vmatprep.subr.mxu0 0.0
      %1146 = vmatpush1.msra.mxu0 0.0
      %1147 = vmatprep.subr.mxu0 0.0
      %1148 = vmatpush1.msra.mxu0 0.0
      %1149 = vmatprep.subr.mxu0 0.0
      %1150 = vmatpush1.msra.mxu0 0.0
      %1151 = vmatprep.subr.mxu0 0.0
      %1152 = vmatpush1.msra.mxu0 0.0
      %1153 = vmatprep.subr.mxu0 0.0
      %1154 = vmatpush1.msra.mxu0 0.0
      %1155 = vmatprep.subr.mxu0 0.0
      %1156 = vmatpush1.msra.mxu0 0.0
      %1157 = vmatprep.subr.mxu0 0.0
      %1158 = vmatpush1.msra.mxu0 0.0
      %1159 = vmatprep.subr.mxu0 0.0
      %1160 = vmatpush1.msra.mxu0 0.0
      %1161 = vmatprep.subr.mxu0 0.0
      %1162 = vmatpush1.msra.mxu0 0.0
      %1163 = vmatprep.subr.mxu0 0.0
      %1164 = vmatpush1.msra.mxu0 0.0
      %1165 = vmatprep.subr.mxu0 0.0
      %1166 = vmatpush1.msra.mxu0 0.0
      %1167 = vmatprep.subr.mxu0 0.0
      %1168 = vmatpush1.msra.mxu0 0.0
      %1169 = vmatprep.subr.mxu0 0.0
      %1170 = vmatpush1.msra.mxu0 0.0
      %1171 = vmatprep.subr.mxu0 0.0
      %1172 = vmatpush1.msra.mxu0 0.0
      %1173 = vmatprep.subr.mxu0 0.0
      %1174 = vmatpush1.msra.mxu0 0.0
      %1175 = vmatprep.subr.mxu0 0.0
      %1176 = vmatpush1.msra.mxu0 0.0
      %1177 = vmatprep.subr.mxu0 0.0
      %1178 = vmatpush1.msra.mxu0 0.0
      %1179 = vmatprep.subr.mxu0 0.0
      %1180 = vmatpush1.msra.mxu0 0.0
      %1181 = vmatprep.subr.mxu0 0.0
      %1182 = vmatpush1.msra.mxu0 0.0
      %1183 = vmatprep.subr.mxu0 0.0
      %1184 = vmatpush1.msra.mxu0 0.0
      %1185 = vmatprep.subr.mxu0 0.0
      %1186 = vmatpush1.msra.mxu0 0.0
      %1187 = vmatprep.subr.mxu0 0.0
      %1188 = vmatpush1.msra.mxu0 0.0
      %1189 = vmatprep.subr.mxu0 0.0
      %1190 = vmatpush1.msra.mxu0 0.0
      %1191 = vmatprep.subr.mxu0 0.0
      %1192 = vmatpush1.msra.mxu0 0.0
      %1193 = vmatprep.subr.mxu0 0.0
      %1194 = vmatpush1.msra.mxu0 0.0
      %1195 = vmatprep.subr.mxu0 0.0
      %1196 = vmatpush1.msra.mxu0 0.0
      %1197 = vmatprep.subr.mxu0 0.0
      %1198 = vmatpush1.msra.mxu0 0.0
      %1199 = vmatprep.mubr.f32.mxu0 0.0
      %1200 = vmatmul.mubr.f32.gmra.mrb[0].mxu0 %v1109
      %v1201 = vpop.f32.mrb[0].mxu0
      %v1202 = vadd.f32 0.0, %v1201
      %v1203 = vpop.f32.mrb[0].mxu0
      %1204 = vmatprep.mubr.f32.mxu0 0.0
      %1205 = vmatmul.mubr.f32.gmra.mrb[0].mxu0 %v1112
      %v1206 = vpop.f32.mrb[0].mxu0
      %v1207 = vadd.f32 0.0, %v1206
      %v1208 = vpop.f32.mrb[0].mxu0
      %1209 = vmatprep.mubr.f32.mxu0 0.0
      %1210 = vmatmul.mubr.f32.gmra.mrb[0].mxu0 %v1115
      %v1211 = vpop.f32.mrb[0].mxu0
      %v1212 = vadd.f32 0.0, %v1211
      %v1213 = vpop.f32.mrb[0].mxu0
      %1214 = vmatprep.mubr.f32.mxu0 0.0
      %1215 = vmatmul.mubr.f32.gmra.mrb[0].mxu0 %v1118
      %v1216 = vpop.f32.mrb[0].mxu0
      %v1217 = vadd.f32 0.0, %v1216
      %v1218 = vpop.f32.mrb[0].mxu0
      %1219 = vmatprep.mubr.f32.mxu0 0.0
      %1220 = vmatmul.mubr.f32.gmra.mrb[0].mxu0 %v1121
      %v1221 = vpop.f32.mrb[0].mxu0
      %v1222 = vadd.f32 0.0, %v1221
      %v1223 = vpop.f32.mrb[0].mxu0
      %1224 = vmatprep.mubr.f32.mxu0 0.0
      %1225 = vmatmul.mubr.f32.gmra.mrb[0].mxu0 %v1124
      %v1226 = vpop.f32.mrb[0].mxu0
      %v1227 = vadd.f32 0.0, %v1226
      %v1228 = vpop.f32.mrb[0].mxu0
      %1229 = vmatprep.mubr.f32.mxu0 0.0
      %1230 = vmatmul.mubr.f32.gmra.mrb[0].mxu0 %v1127
      %v1231 = vpop.f32.mrb[0].mxu0
      %v1232 = vadd.f32 0.0, %v1231
      %v1233 = vpop.f32.mrb[0].mxu0
      %1234 = vmatprep.mubr.f32.mxu0 0.0
      %1235 = vmatmul.mubr.f32.gmra.mrb[0].mxu0 %v1130
      %v1236 = vpop.f32.mrb[0].mxu0
      %v1237 = vadd.f32 0.0, %v1236
      %v1238 = vpop.f32.mrb[0].mxu0
      %1239 = vdwg.mxu0
      %v1240 = vadd.f32 %v1090, %v1202
      %v1241 = vadd.f32 %v1091, %v1207
      %v1242 = vadd.f32 %v1092, %v1212
      %v1243 = vadd.f32 %v1093, %v1217
      %v1244 = vadd.f32 %v1094, %v1222
      %v1245 = vadd.f32 %v1095, %v1227
      %v1246 = vadd.f32 %v1096, %v1232
      %v1247 = vadd.f32 %v1097, %v1237
      %s1248 = scalar_lea.vmem %s332, 16
      %v1249 = vld [vmem:[%s1248] sm:$0xff]
      %v1250 = vld [vmem:[%s1248 + $0x10] sm:$0xff]
      %v1251 = vld [vmem:[%s1248 + $0x20] sm:$0xff]
      %v1252 = vld [vmem:[%s1248 + $0x30] sm:$0xff]
      %v1253 = vld [vmem:[%s1248 + $0x40] sm:$0xff]
      %v1254 = vld [vmem:[%s1248 + $0x50] sm:$0xff]
      %v1255 = vld [vmem:[%s1248 + $0x60] sm:$0xff]
      %v1256 = vld [vmem:[%s1248 + $0x70] sm:$0xff]
      %s1257 = scalar_lea.vmem %s351, 24
      %v1258 = vld [vmem:[%s1257] sm:$0xf]
      %v1260 = vsel %vm382, %v1249, 0
      %v1263 = vsel %vm382, %v1250, 0
      %v1266 = vsel %vm382, %v1251, 0
      %v1269 = vsel %vm382, %v1252, 0
      %v1272 = vsel %vm382, %v1253, 0
      %v1275 = vsel %vm382, %v1254, 0
      %v1278 = vsel %vm382, %v1255, 0
      %v1281 = vsel %vm382, %v1256, 0
      %v1284 = vsel %vm407, %v1258, 0
      %1286 = vmatprep.subr.mxu0 0.0
      %1287 = vmatpush1.msra.mxu0 %v1284
      %1288 = vmatprep.subr.mxu0 0.0
      %1289 = vmatpush1.msra.mxu0 0.0
      %1290 = vmatprep.subr.mxu0 0.0
      %1291 = vmatpush1.msra.mxu0 0.0
      %1292 = vmatprep.subr.mxu0 0.0
      %1293 = vmatpush1.msra.mxu0 0.0
      %1294 = vmatprep.subr.mxu0 0.0
      %1295 = vmatpush1.msra.mxu0 0.0
      %1296 = vmatprep.subr.mxu0 0.0
      %1297 = vmatpush1.msra.mxu0 0.0
      %1298 = vmatprep.subr.mxu0 0.0
      %1299 = vmatpush1.msra.mxu0 0.0
      %1300 = vmatprep.subr.mxu0 0.0
      %1301 = vmatpush1.msra.mxu0 0.0
      %1302 = vmatprep.subr.mxu0 0.0
      %1303 = vmatpush1.msra.mxu0 0.0
      %1304 = vmatprep.subr.mxu0 0.0
      %1305 = vmatpush1.msra.mxu0 0.0
      %1306 = vmatprep.subr.mxu0 0.0
      %1307 = vmatpush1.msra.mxu0 0.0
      %1308 = vmatprep.subr.mxu0 0.0
      %1309 = vmatpush1.msra.mxu0 0.0
      %1310 = vmatprep.subr.mxu0 0.0
      %1311 = vmatpush1.msra.mxu0 0.0
      %1312 = vmatprep.subr.mxu0 0.0
      %1313 = vmatpush1.msra.mxu0 0.0
      %1314 = vmatprep.subr.mxu0 0.0
      %1315 = vmatpush1.msra.mxu0 0.0
      %1316 = vmatprep.subr.mxu0 0.0
      %1317 = vmatpush1.msra.mxu0 0.0
      %1318 = vmatprep.subr.mxu0 0.0
      %1319 = vmatpush1.msra.mxu0 0.0
      %1320 = vmatprep.subr.mxu0 0.0
      %1321 = vmatpush1.msra.mxu0 0.0
      %1322 = vmatprep.subr.mxu0 0.0
      %1323 = vmatpush1.msra.mxu0 0.0
      %1324 = vmatprep.subr.mxu0 0.0
      %1325 = vmatpush1.msra.mxu0 0.0
      %1326 = vmatprep.subr.mxu0 0.0
      %1327 = vmatpush1.msra.mxu0 0.0
      %1328 = vmatprep.subr.mxu0 0.0
      %1329 = vmatpush1.msra.mxu0 0.0
      %1330 = vmatprep.subr.mxu0 0.0
      %1331 = vmatpush1.msra.mxu0 0.0
      %1332 = vmatprep.subr.mxu0 0.0
      %1333 = vmatpush1.msra.mxu0 0.0
      %1334 = vmatprep.subr.mxu0 0.0
      %1335 = vmatpush1.msra.mxu0 0.0
      %1336 = vmatprep.subr.mxu0 0.0
      %1337 = vmatpush1.msra.mxu0 0.0
      %1338 = vmatprep.subr.mxu0 0.0
      %1339 = vmatpush1.msra.mxu0 0.0
      %1340 = vmatprep.subr.mxu0 0.0
      %1341 = vmatpush1.msra.mxu0 0.0
      %1342 = vmatprep.subr.mxu0 0.0
      %1343 = vmatpush1.msra.mxu0 0.0
      %1344 = vmatprep.subr.mxu0 0.0
      %1345 = vmatpush1.msra.mxu0 0.0
      %1346 = vmatprep.subr.mxu0 0.0
      %1347 = vmatpush1.msra.mxu0 0.0
      %1348 = vmatprep.subr.mxu0 0.0
      %1349 = vmatpush1.msra.mxu0 0.0
      %1350 = vmatprep.mubr.f32.mxu0 0.0
      %1351 = vmatmul.mubr.f32.gmra.mrb[0].mxu0 %v1260
      %v1352 = vpop.f32.mrb[0].mxu0
      %v1353 = vadd.f32 0.0, %v1352
      %v1354 = vpop.f32.mrb[0].mxu0
      %1355 = vmatprep.mubr.f32.mxu0 0.0
      %1356 = vmatmul.mubr.f32.gmra.mrb[0].mxu0 %v1263
      %v1357 = vpop.f32.mrb[0].mxu0
      %v1358 = vadd.f32 0.0, %v1357
      %v1359 = vpop.f32.mrb[0].mxu0
      %1360 = vmatprep.mubr.f32.mxu0 0.0
      %1361 = vmatmul.mubr.f32.gmra.mrb[0].mxu0 %v1266
      %v1362 = vpop.f32.mrb[0].mxu0
      %v1363 = vadd.f32 0.0, %v1362
      %v1364 = vpop.f32.mrb[0].mxu0
      %1365 = vmatprep.mubr.f32.mxu0 0.0
      %1366 = vmatmul.mubr.f32.gmra.mrb[0].mxu0 %v1269
      %v1367 = vpop.f32.mrb[0].mxu0
      %v1368 = vadd.f32 0.0, %v1367
      %v1369 = vpop.f32.mrb[0].mxu0
      %1370 = vmatprep.mubr.f32.mxu0 0.0
      %1371 = vmatmul.mubr.f32.gmra.mrb[0].mxu0 %v1272
      %v1372 = vpop.f32.mrb[0].mxu0
      %v1373 = vadd.f32 0.0, %v1372
      %v1374 = vpop.f32.mrb[0].mxu0
      %1375 = vmatprep.mubr.f32.mxu0 0.0
      %1376 = vmatmul.mubr.f32.gmra.mrb[0].mxu0 %v1275
      %v1377 = vpop.f32.mrb[0].mxu0
      %v1378 = vadd.f32 0.0, %v1377
      %v1379 = vpop.f32.mrb[0].mxu0
      %1380 = vmatprep.mubr.f32.mxu0 0.0
      %1381 = vmatmul.mubr.f32.gmra.mrb[0].mxu0 %v1278
      %v1382 = vpop.f32.mrb[0].mxu0
      %v1383 = vadd.f32 0.0, %v1382
      %v1384 = vpop.f32.mrb[0].mxu0
      %1385 = vmatprep.mubr.f32.mxu0 0.0
      %1386 = vmatmul.mubr.f32.gmra.mrb[0].mxu0 %v1281
      %v1387 = vpop.f32.mrb[0].mxu0
      %v1388 = vadd.f32 0.0, %v1387
      %v1389 = vpop.f32.mrb[0].mxu0
      %1390 = vdwg.mxu0
      %v1391 = vadd.f32 %v1240, %v1353
      %v1392 = vadd.f32 %v1241, %v1358
      %v1393 = vadd.f32 %v1242, %v1363
      %v1394 = vadd.f32 %v1243, %v1368
      %v1395 = vadd.f32 %v1244, %v1373
      %v1396 = vadd.f32 %v1245, %v1378
      %v1397 = vadd.f32 %v1246, %v1383
      %v1398 = vadd.f32 %v1247, %v1388
      %s1399 = scalar_lea.vmem %s337, 8
      %v1400 = vld [vmem:[%s1399] sm:$0xff]
      %v1401 = vld [vmem:[%s1399 + $0x8] sm:$0xff]
      %v1402 = vld [vmem:[%s1399 + $0x10] sm:$0xff]
      %v1403 = vld [vmem:[%s1399 + $0x18] sm:$0xff]
      %v1404 = vld [vmem:[%s1399 + $0x20] sm:$0xff]
      %v1405 = vld [vmem:[%s1399 + $0x28] sm:$0xff]
      %v1406 = vld [vmem:[%s1399 + $0x30] sm:$0xff]
      %v1407 = vld [vmem:[%s1399 + $0x38] sm:$0xff]
      %s1408 = scalar_lea.vmem %s351, 28
      %v1409 = vld [vmem:[%s1408] sm:$0xf]
      %v1411 = vsel %vm382, %v1400, 0
      %v1414 = vsel %vm382, %v1401, 0
      %v1417 = vsel %vm382, %v1402, 0
      %v1420 = vsel %vm382, %v1403, 0
      %v1423 = vsel %vm382, %v1404, 0
      %v1426 = vsel %vm382, %v1405, 0
      %v1429 = vsel %vm382, %v1406, 0
      %v1432 = vsel %vm382, %v1407, 0
      %v1435 = vsel %vm407, %v1409, 0
      %1437 = vmatprep.subr.mxu0 0.0
      %1438 = vmatpush1.msra.mxu0 %v1435
      %1439 = vmatprep.subr.mxu0 0.0
      %1440 = vmatpush1.msra.mxu0 0.0
      %1441 = vmatprep.subr.mxu0 0.0
      %1442 = vmatpush1.msra.mxu0 0.0
      %1443 = vmatprep.subr.mxu0 0.0
      %1444 = vmatpush1.msra.mxu0 0.0
      %1445 = vmatprep.subr.mxu0 0.0
      %1446 = vmatpush1.msra.mxu0 0.0
      %1447 = vmatprep.subr.mxu0 0.0
      %1448 = vmatpush1.msra.mxu0 0.0
      %1449 = vmatprep.subr.mxu0 0.0
      %1450 = vmatpush1.msra.mxu0 0.0
      %1451 = vmatprep.subr.mxu0 0.0
      %1452 = vmatpush1.msra.mxu0 0.0
      %1453 = vmatprep.subr.mxu0 0.0
      %1454 = vmatpush1.msra.mxu0 0.0
      %1455 = vmatprep.subr.mxu0 0.0
      %1456 = vmatpush1.msra.mxu0 0.0
      %1457 = vmatprep.subr.mxu0 0.0
      %1458 = vmatpush1.msra.mxu0 0.0
      %1459 = vmatprep.subr.mxu0 0.0
      %1460 = vmatpush1.msra.mxu0 0.0
      %1461 = vmatprep.subr.mxu0 0.0
      %1462 = vmatpush1.msra.mxu0 0.0
      %1463 = vmatprep.subr.mxu0 0.0
      %1464 = vmatpush1.msra.mxu0 0.0
      %1465 = vmatprep.subr.mxu0 0.0
      %1466 = vmatpush1.msra.mxu0 0.0
      %1467 = vmatprep.subr.mxu0 0.0
      %1468 = vmatpush1.msra.mxu0 0.0
      %1469 = vmatprep.subr.mxu0 0.0
      %1470 = vmatpush1.msra.mxu0 0.0
      %1471 = vmatprep.subr.mxu0 0.0
      %1472 = vmatpush1.msra.mxu0 0.0
      %1473 = vmatprep.subr.mxu0 0.0
      %1474 = vmatpush1.msra.mxu0 0.0
      %1475 = vmatprep.subr.mxu0 0.0
      %1476 = vmatpush1.msra.mxu0 0.0
      %1477 = vmatprep.subr.mxu0 0.0
      %1478 = vmatpush1.msra.mxu0 0.0
      %1479 = vmatprep.subr.mxu0 0.0
      %1480 = vmatpush1.msra.mxu0 0.0
      %1481 = vmatprep.subr.mxu0 0.0
      %1482 = vmatpush1.msra.mxu0 0.0
      %1483 = vmatprep.subr.mxu0 0.0
      %1484 = vmatpush1.msra.mxu0 0.0
      %1485 = vmatprep.subr.mxu0 0.0
      %1486 = vmatpush1.msra.mxu0 0.0
      %1487 = vmatprep.subr.mxu0 0.0
      %1488 = vmatpush1.msra.mxu0 0.0
      %1489 = vmatprep.subr.mxu0 0.0
      %1490 = vmatpush1.msra.mxu0 0.0
      %1491 = vmatprep.subr.mxu0 0.0
      %1492 = vmatpush1.msra.mxu0 0.0
      %1493 = vmatprep.subr.mxu0 0.0
      %1494 = vmatpush1.msra.mxu0 0.0
      %1495 = vmatprep.subr.mxu0 0.0
      %1496 = vmatpush1.msra.mxu0 0.0
      %1497 = vmatprep.subr.mxu0 0.0
      %1498 = vmatpush1.msra.mxu0 0.0
      %1499 = vmatprep.subr.mxu0 0.0
      %1500 = vmatpush1.msra.mxu0 0.0
      %1501 = vmatprep.mubr.f32.mxu0 0.0
      %1502 = vmatmul.mubr.f32.gmra.mrb[0].mxu0 %v1411
      %v1503 = vpop.f32.mrb[0].mxu0
      %v1504 = vadd.f32 0.0, %v1503
      %v1505 = vpop.f32.mrb[0].mxu0
      %1506 = vmatprep.mubr.f32.mxu0 0.0
      %1507 = vmatmul.mubr.f32.gmra.mrb[0].mxu0 %v1414
      %v1508 = vpop.f32.mrb[0].mxu0
      %v1509 = vadd.f32 0.0, %v1508
      %v1510 = vpop.f32.mrb[0].mxu0
      %1511 = vmatprep.mubr.f32.mxu0 0.0
      %1512 = vmatmul.mubr.f32.gmra.mrb[0].mxu0 %v1417
      %v1513 = vpop.f32.mrb[0].mxu0
      %v1514 = vadd.f32 0.0, %v1513
      %v1515 = vpop.f32.mrb[0].mxu0
      %1516 = vmatprep.mubr.f32.mxu0 0.0
      %1517 = vmatmul.mubr.f32.gmra.mrb[0].mxu0 %v1420
      %v1518 = vpop.f32.mrb[0].mxu0
      %v1519 = vadd.f32 0.0, %v1518
      %v1520 = vpop.f32.mrb[0].mxu0
      %1521 = vmatprep.mubr.f32.mxu0 0.0
      %1522 = vmatmul.mubr.f32.gmra.mrb[0].mxu0 %v1423
      %v1523 = vpop.f32.mrb[0].mxu0
      %v1524 = vadd.f32 0.0, %v1523
      %v1525 = vpop.f32.mrb[0].mxu0
      %1526 = vmatprep.mubr.f32.mxu0 0.0
      %1527 = vmatmul.mubr.f32.gmra.mrb[0].mxu0 %v1426
      %v1528 = vpop.f32.mrb[0].mxu0
      %v1529 = vadd.f32 0.0, %v1528
      %v1530 = vpop.f32.mrb[0].mxu0
      %1531 = vmatprep.mubr.f32.mxu0 0.0
      %1532 = vmatmul.mubr.f32.gmra.mrb[0].mxu0 %v1429
      %v1533 = vpop.f32.mrb[0].mxu0
      %v1534 = vadd.f32 0.0, %v1533
      %v1535 = vpop.f32.mrb[0].mxu0
      %1536 = vmatprep.mubr.f32.mxu0 0.0
      %1537 = vmatmul.mubr.f32.gmra.mrb[0].mxu0 %v1432
      %v1538 = vpop.f32.mrb[0].mxu0
      %v1539 = vadd.f32 0.0, %v1538
      %v1540 = vpop.f32.mrb[0].mxu0
      %1541 = vdwg.mxu0
      %v1542 = vadd.f32 %v1391, %v1504
      %v1543 = vadd.f32 %v1392, %v1509
      %v1544 = vadd.f32 %v1393, %v1514
      %v1545 = vadd.f32 %v1394, %v1519
      %v1546 = vadd.f32 %v1395, %v1524
      %v1547 = vadd.f32 %v1396, %v1529
      %v1548 = vadd.f32 %v1397, %v1534
      %v1549 = vadd.f32 %v1398, %v1539
      %v1550 = vld [vmem:[%s1248 + $0x1] sm:$0xff]
      %v1551 = vld [vmem:[%s1248 + $0x11] sm:$0xff]
      %v1552 = vld [vmem:[%s1248 + $0x21] sm:$0xff]
      %v1553 = vld [vmem:[%s1248 + $0x31] sm:$0xff]
      %v1554 = vld [vmem:[%s1248 + $0x41] sm:$0xff]
      %v1555 = vld [vmem:[%s1248 + $0x51] sm:$0xff]
      %v1556 = vld [vmem:[%s1248 + $0x61] sm:$0xff]
      %v1557 = vld [vmem:[%s1248 + $0x71] sm:$0xff]
      %s1558 = scalar_lea.vmem %s351, 32
      %v1559 = vld [vmem:[%s1558] sm:$0xf]
      %v1561 = vsel %vm382, %v1550, 0
      %v1564 = vsel %vm382, %v1551, 0
      %v1567 = vsel %vm382, %v1552, 0
      %v1570 = vsel %vm382, %v1553, 0
      %v1573 = vsel %vm382, %v1554, 0
      %v1576 = vsel %vm382, %v1555, 0
      %v1579 = vsel %vm382, %v1556, 0
      %v1582 = vsel %vm382, %v1557, 0
      %v1585 = vsel %vm407, %v1559, 0
      %1587 = vmatprep.subr.mxu0 0.0
      %1588 = vmatpush1.msra.mxu0 %v1585
      %1589 = vmatprep.subr.mxu0 0.0
      %1590 = vmatpush1.msra.mxu0 0.0
      %1591 = vmatprep.subr.mxu0 0.0
      %1592 = vmatpush1.msra.mxu0 0.0
      %1593 = vmatprep.subr.mxu0 0.0
      %1594 = vmatpush1.msra.mxu0 0.0
      %1595 = vmatprep.subr.mxu0 0.0
      %1596 = vmatpush1.msra.mxu0 0.0
      %1597 = vmatprep.subr.mxu0 0.0
      %1598 = vmatpush1.msra.mxu0 0.0
      %1599 = vmatprep.subr.mxu0 0.0
      %1600 = vmatpush1.msra.mxu0 0.0
      %1601 = vmatprep.subr.mxu0 0.0
      %1602 = vmatpush1.msra.mxu0 0.0
      %1603 = vmatprep.subr.mxu0 0.0
      %1604 = vmatpush1.msra.mxu0 0.0
      %1605 = vmatprep.subr.mxu0 0.0
      %1606 = vmatpush1.msra.mxu0 0.0
      %1607 = vmatprep.subr.mxu0 0.0
      %1608 = vmatpush1.msra.mxu0 0.0
      %1609 = vmatprep.subr.mxu0 0.0
      %1610 = vmatpush1.msra.mxu0 0.0
      %1611 = vmatprep.subr.mxu0 0.0
      %1612 = vmatpush1.msra.mxu0 0.0
      %1613 = vmatprep.subr.mxu0 0.0
      %1614 = vmatpush1.msra.mxu0 0.0
      %1615 = vmatprep.subr.mxu0 0.0
      %1616 = vmatpush1.msra.mxu0 0.0
      %1617 = vmatprep.subr.mxu0 0.0
      %1618 = vmatpush1.msra.mxu0 0.0
      %1619 = vmatprep.subr.mxu0 0.0
      %1620 = vmatpush1.msra.mxu0 0.0
      %1621 = vmatprep.subr.mxu0 0.0
      %1622 = vmatpush1.msra.mxu0 0.0
      %1623 = vmatprep.subr.mxu0 0.0
      %1624 = vmatpush1.msra.mxu0 0.0
      %1625 = vmatprep.subr.mxu0 0.0
      %1626 = vmatpush1.msra.mxu0 0.0
      %1627 = vmatprep.subr.mxu0 0.0
      %1628 = vmatpush1.msra.mxu0 0.0
      %1629 = vmatprep.subr.mxu0 0.0
      %1630 = vmatpush1.msra.mxu0 0.0
      %1631 = vmatprep.subr.mxu0 0.0
      %1632 = vmatpush1.msra.mxu0 0.0
      %1633 = vmatprep.subr.mxu0 0.0
      %1634 = vmatpush1.msra.mxu0 0.0
      %1635 = vmatprep.subr.mxu0 0.0
      %1636 = vmatpush1.msra.mxu0 0.0
      %1637 = vmatprep.subr.mxu0 0.0
      %1638 = vmatpush1.msra.mxu0 0.0
      %1639 = vmatprep.subr.mxu0 0.0
      %1640 = vmatpush1.msra.mxu0 0.0
      %1641 = vmatprep.subr.mxu0 0.0
      %1642 = vmatpush1.msra.mxu0 0.0
      %1643 = vmatprep.subr.mxu0 0.0
      %1644 = vmatpush1.msra.mxu0 0.0
      %1645 = vmatprep.subr.mxu0 0.0
      %1646 = vmatpush1.msra.mxu0 0.0
      %1647 = vmatprep.subr.mxu0 0.0
      %1648 = vmatpush1.msra.mxu0 0.0
      %1649 = vmatprep.subr.mxu0 0.0
      %1650 = vmatpush1.msra.mxu0 0.0
      %1651 = vmatprep.mubr.f32.mxu0 0.0
      %1652 = vmatmul.mubr.f32.gmra.mrb[0].mxu0 %v1561
      %v1653 = vpop.f32.mrb[0].mxu0
      %v1654 = vadd.f32 0.0, %v1653
      %v1655 = vpop.f32.mrb[0].mxu0
      %1656 = vmatprep.mubr.f32.mxu0 0.0
      %1657 = vmatmul.mubr.f32.gmra.mrb[0].mxu0 %v1564
      %v1658 = vpop.f32.mrb[0].mxu0
      %v1659 = vadd.f32 0.0, %v1658
      %v1660 = vpop.f32.mrb[0].mxu0
      %1661 = vmatprep.mubr.f32.mxu0 0.0
      %1662 = vmatmul.mubr.f32.gmra.mrb[0].mxu0 %v1567
      %v1663 = vpop.f32.mrb[0].mxu0
      %v1664 = vadd.f32 0.0, %v1663
      %v1665 = vpop.f32.mrb[0].mxu0
      %1666 = vmatprep.mubr.f32.mxu0 0.0
      %1667 = vmatmul.mubr.f32.gmra.mrb[0].mxu0 %v1570
      %v1668 = vpop.f32.mrb[0].mxu0
      %v1669 = vadd.f32 0.0, %v1668
      %v1670 = vpop.f32.mrb[0].mxu0
      %1671 = vmatprep.mubr.f32.mxu0 0.0
      %1672 = vmatmul.mubr.f32.gmra.mrb[0].mxu0 %v1573
      %v1673 = vpop.f32.mrb[0].mxu0
      %v1674 = vadd.f32 0.0, %v1673
      %v1675 = vpop.f32.mrb[0].mxu0
      %1676 = vmatprep.mubr.f32.mxu0 0.0
      %1677 = vmatmul.mubr.f32.gmra.mrb[0].mxu0 %v1576
      %v1678 = vpop.f32.mrb[0].mxu0
      %v1679 = vadd.f32 0.0, %v1678
      %v1680 = vpop.f32.mrb[0].mxu0
      %1681 = vmatprep.mubr.f32.mxu0 0.0
      %1682 = vmatmul.mubr.f32.gmra.mrb[0].mxu0 %v1579
      %v1683 = vpop.f32.mrb[0].mxu0
      %v1684 = vadd.f32 0.0, %v1683
      %v1685 = vpop.f32.mrb[0].mxu0
      %1686 = vmatprep.mubr.f32.mxu0 0.0
      %1687 = vmatmul.mubr.f32.gmra.mrb[0].mxu0 %v1582
      %v1688 = vpop.f32.mrb[0].mxu0
      %v1689 = vadd.f32 0.0, %v1688
      %v1690 = vpop.f32.mrb[0].mxu0
      %1691 = vdwg.mxu0
      %v1692 = vadd.f32 %v1542, %v1654
      %v1693 = vadd.f32 %v1543, %v1659
      %v1694 = vadd.f32 %v1544, %v1664
      %v1695 = vadd.f32 %v1545, %v1669
      %v1696 = vadd.f32 %v1546, %v1674
      %v1697 = vadd.f32 %v1547, %v1679
      %v1698 = vadd.f32 %v1548, %v1684
      %v1699 = vadd.f32 %v1549, %v1689
      %v1700 = vld [vmem:[%s354] sm:$0x1]
      %v1702 = vlaneseq
      %v1703 = vshrl.u32 %v1702, 7
      %v1704 = vsub.s32 0, %v1703
      %v1705 = vrot.slane %v1700, %v1704
      %v1707 = vadd.f32 %v1692, %v1705
      %v1708 = vadd.f32 %v1693, %v1705
      %v1709 = vadd.f32 %v1694, %v1705
      %v1710 = vadd.f32 %v1695, %v1705
      %v1711 = vadd.f32 %v1696, %v1705
      %v1712 = vadd.f32 %v1697, %v1705
      %v1713 = vadd.f32 %v1698, %v1705
      %v1714 = vadd.f32 %v1699, %v1705
      %1715 = vst.msk [vmem:[%s362] sm:$0xff] %vm382, %v1707
      %1716 = vst.msk [vmem:[%s362 + $0x8] sm:$0xff] %vm382, %v1708
      %1717 = vst.msk [vmem:[%s362 + $0x10] sm:$0xff] %vm382, %v1709
      %1718 = vst.msk [vmem:[%s362 + $0x18] sm:$0xff] %vm382, %v1710
      %1719 = vst.msk [vmem:[%s362 + $0x20] sm:$0xff] %vm382, %v1711
      %1720 = vst.msk [vmem:[%s362 + $0x28] sm:$0xff] %vm382, %v1712
      %1721 = vst.msk [vmem:[%s362 + $0x30] sm:$0xff] %vm382, %v1713
      %1722 = vst.msk [vmem:[%s362 + $0x38] sm:$0xff] %vm382, %v1714
      %p1723 = scmp.lt.s32.totalorder %s21, 1
      %s1724 = scalar_select %p1723, %s21, 1
      %p1725 = scmp.lt.s32.totalorder %s22, 0
      %s1726 = scalar_select %p1725, %s22, 0
      %s1727 = smul.addr %s1724, 8
      %s1728 = sadd.s32 %s1726, %s1727
      %s1729 = smul.addr %s1728, 8
      %s1730 = scalar_lea.vmem %s6, %s1729
      // Predicated region
      $region45: #{downsample_with_conv.1} parent=43 // pred_check
        %p1731 = pneg %p205
      $region46: #{downsample_with_conv.1} parent=43 // pred_check_branch
        %1733 = sbr.rel (%p1731) target = $region48
      $region47: #{downsample_with_conv.1} parent=43 // pred_region
        _
      $region48: #{downsample_with_conv.1} parent=43 // pred_fallthru
        _
    $region44: #{downsample_with_conv.1} parent=5 // pred_fallthru
      _
    %p1734 = scmp.le.s32.totalorder 2, %s12
    // Predicated region
    $region49: #{downsample_with_conv.1} parent=5 // pred_check
      %p1735 = pneg %p1734
    $region50: #{downsample_with_conv.1} parent=5 // pred_check_branch
      %1737 = sbr.rel (%p1735) target = $region52
    $region51: #{downsample_with_conv.1} parent=5 // pred_region
      %s1738 = ssub.s32 %s12, 2
      // Predicated region
      $region53: #{downsample_with_conv.1} parent=51 // pred_check
        %p1739 = pneg %p211
      $region54: #{downsample_with_conv.1} parent=51 // pred_check_branch
        %1741 = sbr.rel (%p1739) target = $region56
      $region55: #{downsample_with_conv.1} parent=51 // pred_region
        %p1742 = scmp.lt.s32.totalorder %s23, 1
        %s1743 = scalar_select %p1742, %s23, 1
        %p1744 = scmp.lt.s32.totalorder %s24, 0
        %s1745 = scalar_select %p1744, %s24, 0
        %s1746 = smul.addr %s1743, 8
        %s1747 = sadd.s32 %s1745, %s1746
        %s1748 = smul.addr %s1747, 8
        %s1749 = scalar_lea.vmem %s6, %s1748
      $region56: #{downsample_with_conv.1} parent=51 // pred_fallthru
        _
    $region52: #{downsample_with_conv.1} parent=5 // pred_fallthru
      _
  $region6: #{downsample_with_conv.1} parent=0 // loop_footer
    %s16 = sadd.s32 1, %s12
  $region7: #{downsample_with_conv.1} parent=0 // loop_footer_branch
    %11 = sbr.rel target = $region3
  $region8: #{downsample_with_conv.1} parent=0 // loop_exit
    _

</llo_original>
